<compile_context>
chip_gen: v7x
topology: tpu7x:2x2x1
jax: 0.10.0
libtpu: 0.0.40
codegen_flags: <defaults>
</compile_context>

<pallas_src>
import functools

import jax
import jax.numpy as jnp
import numpy as np
from jax import lax
from jax.experimental import pallas as pl
from jax.experimental.pallas import tpu as pltpu


# ----------------------------------------------------------------------------
# small helpers
# ----------------------------------------------------------------------------
def _cdiv(a, b):
    return -(-a // b)


def _round_up(a, b):
    return _cdiv(a, b) * b


def _pick_vocab_block(vocab, cap, unit=128):
    """Largest multiple of `unit` <= cap that divides vocab; fallback: full vocab."""
    best = vocab
    top = min(cap, vocab)
    for cand in range(unit, top + 1, unit):
        if vocab % cand == 0:
            best = cand
    return best


def _vmem_limit(tile_bytes):
    # 2x for double buffering + headroom; clamp to [16 MiB, 64 MiB] (v7x physical).
    return int(min(64 << 20, max(16 << 20, 2 * tile_bytes + (2 << 20))))


# ----------------------------------------------------------------------------
# Kernel A: non-recurrent input projection, fully parallel over time chunks.
# ----------------------------------------------------------------------------
def _xproj_kernel(emb_ref, wih_ref, brec_ref, xp_ref):
    """emb_ref : (tc, B, E)   wih_ref : (E, H)   brec_ref : (1, H)
       xp_ref  : (tc, B, H) = emb @ W_ih + (b_ih + b_hh)"""
    tc, b, e = emb_ref.shape
    h = xp_ref.shape[-1]
    x = jnp.dot(emb_ref[...].reshape(tc * b, e), wih_ref[...],
                preferred_element_type=jnp.float32)
    x = x + brec_ref[...].astype(jnp.float32)
    xp_ref[...] = x.reshape(tc, b, h).astype(xp_ref.dtype)


# ----------------------------------------------------------------------------
# Kernel B: the sequential recurrence, grid over time chunks ("arbitrary").
# ----------------------------------------------------------------------------
def _recurrence_kernel(xp_ref, whh_ref, hall_ref, h_ref, *, unroll):
    """xp_ref  : (tc, B, H)  precomputed input projection (time chunk)
       whh_ref : (H, H)
       hall_ref: (tc, B, H)  hidden state per step (output, streamed out)
       h_ref   : (B, H) f32  hidden-state carry across grid steps (scratch)"""
    @pl.when(pl.program_id(0) == 0)
    def _():
        h_ref[...] = jnp.zeros_like(h_ref)

    whh = whh_ref[...]
    steps = xp_ref.shape[0]

    def body(t, h):
        pre = xp_ref[t].astype(jnp.float32) + jnp.dot(
            h.astype(whh.dtype), whh, preferred_element_type=jnp.float32)
        h = jnp.tanh(pre)                       # f32 VPU/EUP math
        hall_ref[t] = h.astype(hall_ref.dtype)  # write in place; no big live value
        return h

    h_ref[...] = lax.fori_loop(0, steps, body, h_ref[...], unroll=unroll)


# ----------------------------------------------------------------------------
# Kernel C: output projection + online-LSE masked NLL, vocab-tiled.
# ----------------------------------------------------------------------------
def _proj_loss_kernel(h_ref, tgt_ref, wout_ref, bout_ref, logits_ref, nll_ref,
                      m_ref, l_ref, p_ref):
    """h_ref   : (rb, H)    tgt_ref : (rb, 1) int32 (0 = pad / dummy row)
       wout_ref: (H, tv)    bout_ref: (1, tv)
       logits_ref: (rb, tv) lane-dense logits tile (output)
       nll_ref   : (rb, 1)  per-row masked NLL (written on last vocab tile)
       m_ref/l_ref/p_ref : (rb,1) f32 running max / sum-exp / picked logit."""
    j = pl.program_id(1)

    @pl.when(j == 0)
    def _():
        m_ref[...] = jnp.full_like(m_ref, -jnp.inf)
        l_ref[...] = jnp.zeros_like(l_ref)
        p_ref[...] = jnp.zeros_like(p_ref)

    w = wout_ref[...]
    logits = jnp.dot(h_ref[...].astype(w.dtype), w,
                     preferred_element_type=jnp.float32)
    logits = logits + bout_ref[...].astype(jnp.float32)        # (rb, tv) f32
    logits_ref[...] = logits.astype(logits_ref.dtype)

    tgt = tgt_ref[...]                                         # (rb, 1) int32
    tv = logits.shape[1]
    col = lax.broadcasted_iota(jnp.int32, logits.shape, 1) + j * tv
    p_ref[...] += jnp.sum(jnp.where(col == tgt, logits, 0.0), axis=1, keepdims=True)

    m_prev = m_ref[...]
    m_new = jnp.maximum(m_prev, jnp.max(logits, axis=1, keepdims=True))
    l_ref[...] = (l_ref[...] * jnp.exp(m_prev - m_new)
                  + jnp.sum(jnp.exp(logits - m_new), axis=1, keepdims=True))
    m_ref[...] = m_new

    @pl.when(j == pl.num_programs(1) - 1)
    def _():
        lse = m_ref[...] + jnp.log(l_ref[...])
        mask = (tgt != 0).astype(jnp.float32)
        nll_ref[...] = (lse - p_ref[...]) * mask


# ----------------------------------------------------------------------------
# Wrapper
# ----------------------------------------------------------------------------
def rnn_forward(sent, length, wordvec, w_ih, w_hh, b_ih, b_hh, w_out, b_out,
                *, compute_dtype=jnp.float32, logits_dtype=jnp.float32,
                time_chunk=16, row_block_cap=256, vocab_block_cap=2048):
    """Returns (loss, logits_per_step) matching the PyTorch module.

    sent    : (B, T) int32 token ids, 0 = pad;   length : (B,) int32
    wordvec : (V, E); w_ih : (E, H); w_hh : (H, H); b_* : (1, H)/(1, V); w_out : (H, V)
    """
    B, T = sent.shape
    V, E = wordvec.shape
    H = w_hh.shape[0]
    assert T >= 2, "need at least one step"
    assert B % 8 == 0, "batch must be a multiple of 8 (TPU sublane tile)"
    Tm1 = T - 1

    cd = jnp.dtype(compute_dtype).itemsize
    ld = jnp.dtype(logits_dtype).itemsize

    # ---- tiling --------------------------------------------------------------
    tc = min(time_chunk, Tm1)                       # steps per time chunk
    n_chunks = _cdiv(Tm1, tc)
    Tp = n_chunks * tc                              # time steps, padded

    BT = B * Tm1
    rb = min(row_block_cap, _round_up(BT, 8))       # row block for kernel C
    BTp = _round_up(BT, rb)                         # rows, padded (mask-0 dummies)
    n_row_blocks = BTp // rb

    tv = _pick_vocab_block(V, vocab_block_cap)      # vocab tile (lane-dense)
    n_v_blocks = V // tv

    # ---- embedding gather (XLA), time-major, padded steps --------------------
    ids_tm = jnp.transpose(sent[:, :Tm1])                         # (Tm1, B)
    ids_tm = jnp.pad(ids_tm, ((0, Tp - Tm1), (0, 0)))             # pad steps w/ token 0
    emb_tm = jnp.take(wordvec, ids_tm.reshape(-1), axis=0)        # (Tp*B, E)
    emb_tm = emb_tm.reshape(Tp, B, E).astype(compute_dtype)
    b_rec = (b_ih + b_hh).astype(compute_dtype)                   # fused bias (1, H)

    # ---- Kernel A: xproj = emb @ W_ih + b  (parallel over time chunks) -------
    xproj_tile_bytes = (tc * B * E + tc * B * H + E * H + H) * cd
    xproj = pl.pallas_call(
        _xproj_kernel,
        out_shape=jax.ShapeDtypeStruct((Tp, B, H), compute_dtype),
        grid_spec=pltpu.PrefetchScalarGridSpec(
            num_scalar_prefetch=0,
            grid=(n_chunks,),
            in_specs=[
                pl.BlockSpec((tc, B, E), lambda c: (c, 0, 0)),
                pl.BlockSpec((E, H), lambda c: (0, 0)),
                pl.BlockSpec((1, H), lambda c: (0, 0)),
            ],
            out_specs=pl.BlockSpec((tc, B, H), lambda c: (c, 0, 0)),
        ),
        compiler_params=pltpu.CompilerParams(
            dimension_semantics=("parallel",),
            vmem_limit_bytes=_vmem_limit(xproj_tile_bytes),
        ),
    )(emb_tm, w_ih.astype(compute_dtype), b_rec)

    # ---- Kernel B: sequential recurrence, streamed per time chunk ------------
    rec_tile_bytes = (2 * tc * B * H + H * H) * cd + B * H * 4
    rec_kernel = functools.partial(_recurrence_kernel, unroll=max(1, min(8, tc)))
    h_all = pl.pallas_call(
        rec_kernel,
        out_shape=jax.ShapeDtypeStruct((Tp, B, H), compute_dtype),
        grid_spec=pltpu.PrefetchScalarGridSpec(
            num_scalar_prefetch=0,
            grid=(n_chunks,),
            in_specs=[
                pl.BlockSpec((tc, B, H), lambda c: (c, 0, 0)),   # xproj chunk
                pl.BlockSpec((H, H), lambda c: (0, 0)),          # W_hh
            ],
            out_specs=pl.BlockSpec((tc, B, H), lambda c: (c, 0, 0)),
            scratch_shapes=[pltpu.VMEM((B, H), jnp.float32)],    # hidden-state carry
        ),
        compiler_params=pltpu.CompilerParams(
            dimension_semantics=("arbitrary",),                  # true recurrence
            vmem_limit_bytes=_vmem_limit(rec_tile_bytes),
        ),
    )(xproj, w_hh.astype(compute_dtype))

    # Reorder the SMALL hidden tensor to batch-major so the big logits come out
    # directly in (B, T-1, V); pad rows to a multiple of rb with masked dummies.
    h_bm = jnp.transpose(h_all[:Tm1], (1, 0, 2)).reshape(BT, H)
    tgt_bm = sent[:, 1:].astype(jnp.int32).reshape(BT, 1)
    if BTp != BT:
        h_bm = jnp.pad(h_bm, ((0, BTp - BT), (0, 0)))
        tgt_bm = jnp.pad(tgt_bm, ((0, BTp - BT), (0, 0)))        # tgt 0 -> masked

    # ---- Kernel C: projection + online-LSE masked NLL, vocab-tiled -----------
    proj_tile_bytes = ((rb * H + H * tv + tv) * cd + rb * tv * ld + 2 * rb * 4
                       + 3 * rb * 4)
    logits_flat, nll_flat = pl.pallas_call(
        _proj_loss_kernel,
        out_shape=(
            jax.ShapeDtypeStruct((BTp, V), logits_dtype),
            jax.ShapeDtypeStruct((BTp, 1), jnp.float32),
        ),
        grid_spec=pltpu.PrefetchScalarGridSpec(
            num_scalar_prefetch=0,
            grid=(n_row_blocks, n_v_blocks),
            in_specs=[
                pl.BlockSpec((rb, H), lambda i, j: (i, 0)),      # hidden rows
                pl.BlockSpec((rb, 1), lambda i, j: (i, 0)),      # targets
                pl.BlockSpec((H, tv), lambda i, j: (0, j)),      # W_out vocab tile
                pl.BlockSpec((1, tv), lambda i, j: (0, j)),      # b_out vocab tile
            ],
            out_specs=[
                pl.BlockSpec((rb, tv), lambda i, j: (i, j)),     # logits tile
                pl.BlockSpec((rb, 1), lambda i, j: (i, 0)),      # per-row NLL
            ],
            scratch_shapes=[pltpu.VMEM((rb, 1), jnp.float32)] * 3,
        ),
        compiler_params=pltpu.CompilerParams(
            dimension_semantics=("parallel", "arbitrary"),
            vmem_limit_bytes=_vmem_limit(proj_tile_bytes),
        ),
    )(h_bm, tgt_bm, w_out.astype(compute_dtype), b_out.astype(compute_dtype))

    loss = jnp.sum(nll_flat) / jnp.sum(length).astype(jnp.float32)  # pad rows are 0
    logits_per_step = logits_flat[:BT].reshape(B, Tm1, V)           # no logits transpose
    return loss, logits_per_step


rnn_forward_jit = jax.jit(
    rnn_forward,
    static_argnames=("compute_dtype", "logits_dtype", "time_chunk",
                     "row_block_cap", "vocab_block_cap"))


# ----------------------------------------------------------------------------
# Pure-JAX reference mirroring the PyTorch loop (correctness check only).
# ----------------------------------------------------------------------------
def _reference_forward(sent, length, wordvec, w_ih, w_hh, b_ih, b_hh, w_out, b_out):
    B, T = sent.shape
    H = w_hh.shape[0]
    emb = jnp.take(wordvec, sent, axis=0)
    h = jnp.zeros((B, H), jnp.float32)
    logits_steps = []
    loss = 0.0
    for i in range(T - 1):
        h = jnp.tanh(emb[:, i] @ w_ih + b_ih + h @ w_hh + b_hh)
        logits = h @ w_out + b_out
        logits_steps.append(logits)
        front = sent[:, i + 1]
        logp = jax.nn.log_softmax(logits, axis=1)
        nll = -jnp.take_along_axis(logp, front[:, None], axis=1)[:, 0]
        loss = loss + jnp.sum(jnp.where(front != 0, nll, 0.0))
    loss = loss / jnp.sum(length).astype(jnp.float32)
    return loss, jnp.stack(logits_steps, axis=1)


if __name__ == "__main__":
    # Small, tile-friendly shapes.
    B, T = 8, 8            # batch, sequence length
    E, H, V = 32, 32, 128  # embed units, hidden units, vocab size

    key = jax.random.PRNGKey(0)
    k_vec, k_ih, k_hh, k_bi, k_bh, k_o, k_bo, k_sent, k_len = jax.random.split(key, 9)

    wordvec = jax.random.normal(k_vec, (V, E), jnp.float32) * 0.1
    w_ih = jax.random.normal(k_ih, (E, H), jnp.float32) * (1.0 / np.sqrt(E))
    w_hh = jax.random.normal(k_hh, (H, H), jnp.float32) * (1.0 / np.sqrt(H))
    b_ih = jax.random.normal(k_bi, (1, H), jnp.float32) * 0.01
    b_hh = jax.random.normal(k_bh, (1, H), jnp.float32) * 0.01
    w_out = jax.random.normal(k_o, (H, V), jnp.float32) * (1.0 / np.sqrt(H))
    b_out = jax.random.normal(k_bo, (1, V), jnp.float32) * 0.01

    # Tokens in [1, V); pad (id 0) after each sequence's length.
    sent = jax.random.randint(k_sent, (B, T), 1, V, dtype=jnp.int32)
    length = jax.random.randint(k_len, (B,), 3, T + 1, dtype=jnp.int32)
    pos = jnp.arange(T)[None, :]
    sent = jnp.where(pos < length[:, None], sent, 0)

    # f32 MXU operands: exact match with the reference.
    loss, logits = rnn_forward_jit(sent, length, wordvec, w_ih, w_hh,
                                   b_ih, b_hh, w_out, b_out)
    jax.block_until_ready((loss, logits))

    loss_ref, logits_ref = _reference_forward(
        sent, length, wordvec, w_ih, w_hh, b_ih, b_hh, w_out, b_out)
    np.testing.assert_allclose(np.asarray(logits), np.asarray(logits_ref),
                               rtol=1e-5, atol=1e-5)
    np.testing.assert_allclose(np.asarray(loss), np.asarray(loss_ref),
                               rtol=1e-5, atol=1e-5)

    # bf16 MXU-operand path (what to use at realistic sizes on v5e/v6e/v7x):
    # matmul inputs bf16, f32 accumulation, f32 tanh/LSE, bf16 logits writeback.
    loss_bf, logits_bf = rnn_forward_jit(sent, length, wordvec, w_ih, w_hh,
                                         b_ih, b_hh, w_out, b_out,
                                         compute_dtype=jnp.bfloat16,
                                         logits_dtype=jnp.bfloat16)
    jax.block_until_ready((loss_bf, logits_bf))
    np.testing.assert_allclose(np.asarray(loss_bf), np.asarray(loss_ref),
                               rtol=1e-1, atol=1e-1)

    print("KERNEL_OK")
</pallas_src>

<mosaic_0001>
module attributes {stable_mosaic.version = 11 : i64} {
  func.func @_xproj_kernel(%arg0: i32, %arg1: memref<7x8x32xf32, #tpu.memory_space<vmem>>, %arg2: memref<32x32xf32, #tpu.memory_space<vmem>>, %arg3: memref<1x32xf32, #tpu.memory_space<vmem>>, %arg4: memref<7x8x32xf32, #tpu.memory_space<vmem>>) attributes {dimension_semantics = [#tpu.dimension_semantics<parallel>], iteration_bounds = array<i64: 1>, scalar_prefetch = 0 : i64, scratch_operands = 0 : i64, tpu.core_type = #tpu.core_type<tc>, window_params = [{transform_indices = @transform_0, window_bounds = array<i64: 7, 8, 32>}, {pipeline_mode = #tpu.pipeline_mode<synchronous>, transform_indices = @transform_1, window_bounds = array<i64: 32, 32>}, {pipeline_mode = #tpu.pipeline_mode<synchronous>, transform_indices = @transform_2, window_bounds = array<i64: 1, 32>}, {transform_indices = @transform_3, window_bounds = array<i64: 7, 8, 32>}]} {
    %c0 = arith.constant 0 : index
    %c0_0 = arith.constant 0 : index
    %c0_1 = arith.constant 0 : index
    %0 = vector.load %arg1[%c0, %c0_0, %c0_1] : memref<7x8x32xf32, #tpu.memory_space<vmem>>, vector<7x8x32xf32>
    %1 = vector.shape_cast %0 : vector<7x8x32xf32> to vector<56x32xf32>
    %c0_2 = arith.constant 0 : index
    %c0_3 = arith.constant 0 : index
    %2 = vector.load %arg2[%c0_2, %c0_3] : memref<32x32xf32, #tpu.memory_space<vmem>>, vector<32x32xf32>
    %cst = arith.constant dense<0.000000e+00> : vector<56x32xf32>
    %3 = tpu.matmul %1, %2, %cst {dimension_numbers = #tpu.dot_dimension_numbers<[1], [0], [0], [1], [0, 0, 1, 1], [], []>} : vector<56x32xf32>, vector<32x32xf32>, vector<56x32xf32> -> vector<56x32xf32>
    %c0_4 = arith.constant 0 : index
    %c0_5 = arith.constant 0 : index
    %4 = vector.load %arg3[%c0_4, %c0_5] : memref<1x32xf32, #tpu.memory_space<vmem>>, vector<1x32xf32>
    %5 = vector.broadcast %4 : vector<1x32xf32> to vector<56x32xf32>
    %6 = arith.addf %3, %5 : vector<56x32xf32>
    %7 = vector.shape_cast %6 : vector<56x32xf32> to vector<7x8x32xf32>
    %c0_6 = arith.constant 0 : index
    %c0_7 = arith.constant 0 : index
    %c0_8 = arith.constant 0 : index
    %8 = vector.load %arg4[%c0_6, %c0_7, %c0_8] : memref<7x8x32xf32, #tpu.memory_space<vmem>>, vector<7x8x32xf32>
    tpu.vector_store %arg4[%c0_6, %c0_7, %c0_8], %7 {strides = array<i32>} : memref<7x8x32xf32, #tpu.memory_space<vmem>>, vector<7x8x32xf32>,
    return
  }
  func.func @transform_0(%arg0: i32) -> (i32, i32, i32) {
    %c0_i32 = arith.constant 0 : i32
    %c0_i32_0 = arith.constant 0 : i32
    %c0_i32_1 = arith.constant 0 : i32
    return %arg0, %c0_i32, %c0_i32_0 : i32, i32, i32
  }
  func.func @transform_1(%arg0: i32) -> (i32, i32) {
    %c0_i32 = arith.constant 0 : i32
    %c0_i32_0 = arith.constant 0 : i32
    %c0_i32_1 = arith.constant 0 : i32
    return %c0_i32, %c0_i32_0 : i32, i32
  }
  func.func @transform_2(%arg0: i32) -> (i32, i32) {
    %c0_i32 = arith.constant 0 : i32
    %c0_i32_0 = arith.constant 0 : i32
    %c0_i32_1 = arith.constant 0 : i32
    return %c0_i32, %c0_i32_0 : i32, i32
  }
  func.func @transform_3(%arg0: i32) -> (i32, i32, i32) {
    %c0_i32 = arith.constant 0 : i32
    %c0_i32_0 = arith.constant 0 : i32
    %c0_i32_1 = arith.constant 0 : i32
    return %arg0, %c0_i32, %c0_i32_0 : i32, i32, i32
  }
}

module attributes {stable_mosaic.version = 11 : i64} {
  func.func @_recurrence_kernel(%arg0: i32, %arg1: memref<7x8x32xf32, #tpu.memory_space<vmem>>, %arg2: memref<32x32xf32, #tpu.memory_space<vmem>>, %arg3: memref<7x8x32xf32, #tpu.memory_space<vmem>>, %arg4: memref<8x32xf32, #tpu.memory_space<vmem>>) attributes {dimension_semantics = [#tpu.dimension_semantics<arbitrary>], iteration_bounds = array<i64: 1>, scalar_prefetch = 0 : i64, scratch_operands = 1 : i64, tpu.core_type = #tpu.core_type<tc>, window_params = [{transform_indices = @transform_0, window_bounds = array<i64: 7, 8, 32>}, {pipeline_mode = #tpu.pipeline_mode<synchronous>, transform_indices = @transform_1, window_bounds = array<i64: 32, 32>}, {transform_indices = @transform_2, window_bounds = array<i64: 7, 8, 32>}]} {
    %c0_i32 = arith.constant 0 : i32
    %0 = arith.cmpi eq, %arg0, %c0_i32 : i32
    %1 = arith.extui %0 : i1 to i32
    %c0_i32_0 = arith.constant 0 : i32
    %2 = arith.cmpi ne, %1, %c0_i32_0 : i32
    scf.if %2 {
      %cst_41 = arith.constant 0.000000e+00 : f32
      %76 = vector.broadcast %cst_41 : f32 to vector<8x32xf32>
      %c0_42 = arith.constant 0 : index
      %c0_43 = arith.constant 0 : index
      %77 = vector.load %arg4[%c0_42, %c0_43] : memref<8x32xf32, #tpu.memory_space<vmem>>, vector<8x32xf32>
      tpu.vector_store %arg4[%c0_42, %c0_43], %76 {strides = array<i32>} : memref<8x32xf32, #tpu.memory_space<vmem>>, vector<8x32xf32>,
    } else {
    }
    %c0 = arith.constant 0 : index
    %c0_1 = arith.constant 0 : index
    %3 = vector.load %arg2[%c0, %c0_1] : memref<32x32xf32, #tpu.memory_space<vmem>>, vector<32x32xf32>
    %c0_2 = arith.constant 0 : index
    %c0_3 = arith.constant 0 : index
    %4 = vector.load %arg4[%c0_2, %c0_3] : memref<8x32xf32, #tpu.memory_space<vmem>>, vector<8x32xf32>
    %c0_i32_4 = arith.constant 0 : i32
    %5 = arith.index_cast %c0_i32_4 : i32 to index
    %c0_5 = arith.constant 0 : index
    %c0_6 = arith.constant 0 : index
    %6 = vector.load %arg1[%5, %c0_5, %c0_6] : memref<7x8x32xf32, #tpu.memory_space<vmem>>, vector<1x8x32xf32>
    %7 = vector.shape_cast %6 : vector<1x8x32xf32> to vector<8x32xf32>
    %cst = arith.constant dense<0.000000e+00> : vector<8x32xf32>
    %8 = tpu.matmul %4, %3, %cst {dimension_numbers = #tpu.dot_dimension_numbers<[1], [0], [0], [1], [0, 0, 1, 1], [], []>} : vector<8x32xf32>, vector<32x32xf32>, vector<8x32xf32> -> vector<8x32xf32>
    %9 = arith.addf %7, %8 : vector<8x32xf32>
    %10 = math.tanh %9 : vector<8x32xf32>
    %11 = arith.index_cast %c0_i32_4 : i32 to index
    %c0_7 = arith.constant 0 : index
    %c0_8 = arith.constant 0 : index
    %12 = vector.load %arg3[%11, %c0_7, %c0_8] : memref<7x8x32xf32, #tpu.memory_space<vmem>>, vector<1x8x32xf32>
    %13 = vector.shape_cast %12 : vector<1x8x32xf32> to vector<8x32xf32>
    %14 = vector.shape_cast %10 : vector<8x32xf32> to vector<1x8x32xf32>
    tpu.vector_store %arg3[%11, %c0_7, %c0_8], %14 {strides = array<i32>} : memref<7x8x32xf32, #tpu.memory_space<vmem>>, vector<1x8x32xf32>,
    %c1_i32 = arith.constant 1 : i32
    %15 = arith.index_cast %c1_i32 : i32 to index
    %c0_9 = arith.constant 0 : index
    %c0_10 = arith.constant 0 : index
    %16 = vector.load %arg1[%15, %c0_9, %c0_10] : memref<7x8x32xf32, #tpu.memory_space<vmem>>, vector<1x8x32xf32>
    %17 = vector.shape_cast %16 : vector<1x8x32xf32> to vector<8x32xf32>
    %cst_11 = arith.constant dense<0.000000e+00> : vector<8x32xf32>
    %18 = tpu.matmul %10, %3, %cst_11 {dimension_numbers = #tpu.dot_dimension_numbers<[1], [0], [0], [1], [0, 0, 1, 1], [], []>} : vector<8x32xf32>, vector<32x32xf32>, vector<8x32xf32> -> vector<8x32xf32>
    %19 = arith.addf %17, %18 : vector<8x32xf32>
    %20 = math.tanh %19 : vector<8x32xf32>
    %21 = arith.index_cast %c1_i32 : i32 to index
    %c0_12 = arith.constant 0 : index
    %c0_13 = arith.constant 0 : index
    %22 = vector.load %arg3[%21, %c0_12, %c0_13] : memref<7x8x32xf32, #tpu.memory_space<vmem>>, vector<1x8x32xf32>
    %23 = vector.shape_cast %22 : vector<1x8x32xf32> to vector<8x32xf32>
    %24 = vector.shape_cast %20 : vector<8x32xf32> to vector<1x8x32xf32>
    tpu.vector_store %arg3[%21, %c0_12, %c0_13], %24 {strides = array<i32>} : memref<7x8x32xf32, #tpu.memory_space<vmem>>, vector<1x8x32xf32>,
    %c2_i32 = arith.constant 2 : i32
    %25 = arith.index_cast %c2_i32 : i32 to index
    %c0_14 = arith.constant 0 : index
    %c0_15 = arith.constant 0 : index
    %26 = vector.load %arg1[%25, %c0_14, %c0_15] : memref<7x8x32xf32, #tpu.memory_space<vmem>>, vector<1x8x32xf32>
    %27 = vector.shape_cast %26 : vector<1x8x32xf32> to vector<8x32xf32>
    %cst_16 = arith.constant dense<0.000000e+00> : vector<8x32xf32>
    %28 = tpu.matmul %20, %3, %cst_16 {dimension_numbers = #tpu.dot_dimension_numbers<[1], [0], [0], [1], [0, 0, 1, 1], [], []>} : vector<8x32xf32>, vector<32x32xf32>, vector<8x32xf32> -> vector<8x32xf32>
    %29 = arith.addf %27, %28 : vector<8x32xf32>
    %30 = math.tanh %29 : vector<8x32xf32>
    %31 = arith.index_cast %c2_i32 : i32 to index
    %c0_17 = arith.constant 0 : index
    %c0_18 = arith.constant 0 : index
    %32 = vector.load %arg3[%31, %c0_17, %c0_18] : memref<7x8x32xf32, #tpu.memory_space<vmem>>, vector<1x8x32xf32>
    %33 = vector.shape_cast %32 : vector<1x8x32xf32> to vector<8x32xf32>
    %34 = vector.shape_cast %30 : vector<8x32xf32> to vector<1x8x32xf32>
    tpu.vector_store %arg3[%31, %c0_17, %c0_18], %34 {strides = array<i32>} : memref<7x8x32xf32, #tpu.memory_space<vmem>>, vector<1x8x32xf32>,
    %c3_i32 = arith.constant 3 : i32
    %35 = arith.index_cast %c3_i32 : i32 to index
    %c0_19 = arith.constant 0 : index
    %c0_20 = arith.constant 0 : index
    %36 = vector.load %arg1[%35, %c0_19, %c0_20] : memref<7x8x32xf32, #tpu.memory_space<vmem>>, vector<1x8x32xf32>
    %37 = vector.shape_cast %36 : vector<1x8x32xf32> to vector<8x32xf32>
    %cst_21 = arith.constant dense<0.000000e+00> : vector<8x32xf32>
    %38 = tpu.matmul %30, %3, %cst_21 {dimension_numbers = #tpu.dot_dimension_numbers<[1], [0], [0], [1], [0, 0, 1, 1], [], []>} : vector<8x32xf32>, vector<32x32xf32>, vector<8x32xf32> -> vector<8x32xf32>
    %39 = arith.addf %37, %38 : vector<8x32xf32>
    %40 = math.tanh %39 : vector<8x32xf32>
    %41 = arith.index_cast %c3_i32 : i32 to index
    %c0_22 = arith.constant 0 : index
    %c0_23 = arith.constant 0 : index
    %42 = vector.load %arg3[%41, %c0_22, %c0_23] : memref<7x8x32xf32, #tpu.memory_space<vmem>>, vector<1x8x32xf32>
    %43 = vector.shape_cast %42 : vector<1x8x32xf32> to vector<8x32xf32>
    %44 = vector.shape_cast %40 : vector<8x32xf32> to vector<1x8x32xf32>
    tpu.vector_store %arg3[%41, %c0_22, %c0_23], %44 {strides = array<i32>} : memref<7x8x32xf32, #tpu.memory_space<vmem>>, vector<1x8x32xf32>,
    %c4_i32 = arith.constant 4 : i32
    %45 = arith.index_cast %c4_i32 : i32 to index
    %c0_24 = arith.constant 0 : index
    %c0_25 = arith.constant 0 : index
    %46 = vector.load %arg1[%45, %c0_24, %c0_25] : memref<7x8x32xf32, #tpu.memory_space<vmem>>, vector<1x8x32xf32>
    %47 = vector.shape_cast %46 : vector<1x8x32xf32> to vector<8x32xf32>
    %cst_26 = arith.constant dense<0.000000e+00> : vector<8x32xf32>
    %48 = tpu.matmul %40, %3, %cst_26 {dimension_numbers = #tpu.dot_dimension_numbers<[1], [0], [0], [1], [0, 0, 1, 1], [], []>} : vector<8x32xf32>, vector<32x32xf32>, vector<8x32xf32> -> vector<8x32xf32>
    %49 = arith.addf %47, %48 : vector<8x32xf32>
    %50 = math.tanh %49 : vector<8x32xf32>
    %51 = arith.index_cast %c4_i32 : i32 to index
    %c0_27 = arith.constant 0 : index
    %c0_28 = arith.constant 0 : index
    %52 = vector.load %arg3[%51, %c0_27, %c0_28] : memref<7x8x32xf32, #tpu.memory_space<vmem>>, vector<1x8x32xf32>
    %53 = vector.shape_cast %52 : vector<1x8x32xf32> to vector<8x32xf32>
    %54 = vector.shape_cast %50 : vector<8x32xf32> to vector<1x8x32xf32>
    tpu.vector_store %arg3[%51, %c0_27, %c0_28], %54 {strides = array<i32>} : memref<7x8x32xf32, #tpu.memory_space<vmem>>, vector<1x8x32xf32>,
    %c5_i32 = arith.constant 5 : i32
    %55 = arith.index_cast %c5_i32 : i32 to index
    %c0_29 = arith.constant 0 : index
    %c0_30 = arith.constant 0 : index
    %56 = vector.load %arg1[%55, %c0_29, %c0_30] : memref<7x8x32xf32, #tpu.memory_space<vmem>>, vector<1x8x32xf32>
    %57 = vector.shape_cast %56 : vector<1x8x32xf32> to vector<8x32xf32>
    %cst_31 = arith.constant dense<0.000000e+00> : vector<8x32xf32>
    %58 = tpu.matmul %50, %3, %cst_31 {dimension_numbers = #tpu.dot_dimension_numbers<[1], [0], [0], [1], [0, 0, 1, 1], [], []>} : vector<8x32xf32>, vector<32x32xf32>, vector<8x32xf32> -> vector<8x32xf32>
    %59 = arith.addf %57, %58 : vector<8x32xf32>
    %60 = math.tanh %59 : vector<8x32xf32>
    %61 = arith.index_cast %c5_i32 : i32 to index
    %c0_32 = arith.constant 0 : index
    %c0_33 = arith.constant 0 : index
    %62 = vector.load %arg3[%61, %c0_32, %c0_33] : memref<7x8x32xf32, #tpu.memory_space<vmem>>, vector<1x8x32xf32>
    %63 = vector.shape_cast %62 : vector<1x8x32xf32> to vector<8x32xf32>
    %64 = vector.shape_cast %60 : vector<8x32xf32> to vector<1x8x32xf32>
    tpu.vector_store %arg3[%61, %c0_32, %c0_33], %64 {strides = array<i32>} : memref<7x8x32xf32, #tpu.memory_space<vmem>>, vector<1x8x32xf32>,
    %c6_i32 = arith.constant 6 : i32
    %65 = arith.index_cast %c6_i32 : i32 to index
    %c0_34 = arith.constant 0 : index
    %c0_35 = arith.constant 0 : index
    %66 = vector.load %arg1[%65, %c0_34, %c0_35] : memref<7x8x32xf32, #tpu.memory_space<vmem>>, vector<1x8x32xf32>
    %67 = vector.shape_cast %66 : vector<1x8x32xf32> to vector<8x32xf32>
    %cst_36 = arith.constant dense<0.000000e+00> : vector<8x32xf32>
    %68 = tpu.matmul %60, %3, %cst_36 {dimension_numbers = #tpu.dot_dimension_numbers<[1], [0], [0], [1], [0, 0, 1, 1], [], []>} : vector<8x32xf32>, vector<32x32xf32>, vector<8x32xf32> -> vector<8x32xf32>
    %69 = arith.addf %67, %68 : vector<8x32xf32>
    %70 = math.tanh %69 : vector<8x32xf32>
    %71 = arith.index_cast %c6_i32 : i32 to index
    %c0_37 = arith.constant 0 : index
    %c0_38 = arith.constant 0 : index
    %72 = vector.load %arg3[%71, %c0_37, %c0_38] : memref<7x8x32xf32, #tpu.memory_space<vmem>>, vector<1x8x32xf32>
    %73 = vector.shape_cast %72 : vector<1x8x32xf32> to vector<8x32xf32>
    %74 = vector.shape_cast %70 : vector<8x32xf32> to vector<1x8x32xf32>
    tpu.vector_store %arg3[%71, %c0_37, %c0_38], %74 {strides = array<i32>} : memref<7x8x32xf32, #tpu.memory_space<vmem>>, vector<1x8x32xf32>,
    %c7_i32 = arith.constant 7 : i32
    %c0_39 = arith.constant 0 : index
    %c0_40 = arith.constant 0 : index
    %75 = vector.load %arg4[%c0_39, %c0_40] : memref<8x32xf32, #tpu.memory_space<vmem>>, vector<8x32xf32>
    tpu.vector_store %arg4[%c0_39, %c0_40], %70 {strides = array<i32>} : memref<8x32xf32, #tpu.memory_space<vmem>>, vector<8x32xf32>,
    return
  }
  func.func @transform_0(%arg0: i32) -> (i32, i32, i32) {
    %c0_i32 = arith.constant 0 : i32
    %c0_i32_0 = arith.constant 0 : i32
    %c0_i32_1 = arith.constant 0 : i32
    return %arg0, %c0_i32, %c0_i32_0 : i32, i32, i32
  }
  func.func @transform_1(%arg0: i32) -> (i32, i32) {
    %c0_i32 = arith.constant 0 : i32
    %c0_i32_0 = arith.constant 0 : i32
    %c0_i32_1 = arith.constant 0 : i32
    return %c0_i32, %c0_i32_0 : i32, i32
  }
  func.func @transform_2(%arg0: i32) -> (i32, i32, i32) {
    %c0_i32 = arith.constant 0 : i32
    %c0_i32_0 = arith.constant 0 : i32
    %c0_i32_1 = arith.constant 0 : i32
    return %arg0, %c0_i32, %c0_i32_0 : i32, i32, i32
  }
}

module attributes {stable_mosaic.version = 11 : i64} {
  func.func @_proj_loss_kernel(%arg0: i32, %arg1: i32, %arg2: memref<56x32xf32, #tpu.memory_space<vmem>>, %arg3: memref<56x1xi32, #tpu.memory_space<vmem>>, %arg4: memref<32x128xf32, #tpu.memory_space<vmem>>, %arg5: memref<1x128xf32, #tpu.memory_space<vmem>>, %arg6: memref<56x128xf32, #tpu.memory_space<vmem>>, %arg7: memref<56x1xf32, #tpu.memory_space<vmem>>, %arg8: memref<56x1xf32, #tpu.memory_space<vmem>>, %arg9: memref<56x1xf32, #tpu.memory_space<vmem>>, %arg10: memref<56x1xf32, #tpu.memory_space<vmem>>) attributes {dimension_semantics = [#tpu.dimension_semantics<parallel>, #tpu.dimension_semantics<arbitrary>], iteration_bounds = array<i64: 1, 1>, scalar_prefetch = 0 : i64, scratch_operands = 3 : i64, tpu.core_type = #tpu.core_type<tc>, window_params = [{transform_indices = @transform_0, window_bounds = array<i64: 56, 32>}, {transform_indices = @transform_1, window_bounds = array<i64: 56, 1>}, {transform_indices = @transform_2, window_bounds = array<i64: 32, 128>}, {transform_indices = @transform_3, window_bounds = array<i64: 1, 128>}, {transform_indices = @transform_4, window_bounds = array<i64: 56, 128>}, {transform_indices = @transform_5, window_bounds = array<i64: 56, 1>}]} {
    %c0_i32 = arith.constant 0 : i32
    %0 = arith.cmpi eq, %arg1, %c0_i32 : i32
    %1 = arith.extui %0 : i1 to i32
    %c0_i32_0 = arith.constant 0 : i32
    %2 = arith.cmpi ne, %1, %c0_i32_0 : i32
    scf.if %2 {
      %cst_28 = arith.constant 0xFF800000 : f32
      %43 = vector.broadcast %cst_28 : f32 to vector<56x1xf32>
      %c0_29 = arith.constant 0 : index
      %c0_30 = arith.constant 0 : index
      %44 = vector.load %arg8[%c0_29, %c0_30] : memref<56x1xf32, #tpu.memory_space<vmem>>, vector<56x1xf32>
      tpu.vector_store %arg8[%c0_29, %c0_30], %43 {strides = array<i32>} : memref<56x1xf32, #tpu.memory_space<vmem>>, vector<56x1xf32>,
      %cst_31 = arith.constant 0.000000e+00 : f32
      %45 = vector.broadcast %cst_31 : f32 to vector<56x1xf32>
      %c0_32 = arith.constant 0 : index
      %c0_33 = arith.constant 0 : index
      %46 = vector.load %arg9[%c0_32, %c0_33] : memref<56x1xf32, #tpu.memory_space<vmem>>, vector<56x1xf32>
      tpu.vector_store %arg9[%c0_32, %c0_33], %45 {strides = array<i32>} : memref<56x1xf32, #tpu.memory_space<vmem>>, vector<56x1xf32>,
      %cst_34 = arith.constant 0.000000e+00 : f32
      %47 = vector.broadcast %cst_34 : f32 to vector<56x1xf32>
      %c0_35 = arith.constant 0 : index
      %c0_36 = arith.constant 0 : index
      %48 = vector.load %arg10[%c0_35, %c0_36] : memref<56x1xf32, #tpu.memory_space<vmem>>, vector<56x1xf32>
      tpu.vector_store %arg10[%c0_35, %c0_36], %47 {strides = array<i32>} : memref<56x1xf32, #tpu.memory_space<vmem>>, vector<56x1xf32>,
    } else {
    }
    %c0 = arith.constant 0 : index
    %c0_1 = arith.constant 0 : index
    %3 = vector.load %arg4[%c0, %c0_1] : memref<32x128xf32, #tpu.memory_space<vmem>>, vector<32x128xf32>
    %c0_2 = arith.constant 0 : index
    %c0_3 = arith.constant 0 : index
    %4 = vector.load %arg2[%c0_2, %c0_3] : memref<56x32xf32, #tpu.memory_space<vmem>>, vector<56x32xf32>
    %cst = arith.constant dense<0.000000e+00> : vector<56x128xf32>
    %5 = tpu.matmul %4, %3, %cst {dimension_numbers = #tpu.dot_dimension_numbers<[1], [0], [0], [1], [0, 0, 1, 1], [], []>} : vector<56x32xf32>, vector<32x128xf32>, vector<56x128xf32> -> vector<56x128xf32>
    %c0_4 = arith.constant 0 : index
    %c0_5 = arith.constant 0 : index
    %6 = vector.load %arg5[%c0_4, %c0_5] : memref<1x128xf32, #tpu.memory_space<vmem>>, vector<1x128xf32>
    %7 = vector.broadcast %6 : vector<1x128xf32> to vector<56x128xf32>
    %8 = arith.addf %5, %7 : vector<56x128xf32>
    %c0_6 = arith.constant 0 : index
    %c0_7 = arith.constant 0 : index
    %9 = vector.load %arg6[%c0_6, %c0_7] : memref<56x128xf32, #tpu.memory_space<vmem>>, vector<56x128xf32>
    tpu.vector_store %arg6[%c0_6, %c0_7], %8 {strides = array<i32>} : memref<56x128xf32, #tpu.memory_space<vmem>>, vector<56x128xf32>,
    %c0_8 = arith.constant 0 : index
    %c0_9 = arith.constant 0 : index
    %10 = vector.load %arg3[%c0_8, %c0_9] : memref<56x1xi32, #tpu.memory_space<vmem>>, vector<56x1xi32>
    %11 = tpu.iota {dimensions = array<i32: 1>} : vector<56x128xi32>
    %c128_i32 = arith.constant 128 : i32
    %12 = arith.muli %arg1, %c128_i32 : i32
    %13 = vector.broadcast %12 : i32 to vector<56x128xi32>
    %14 = arith.addi %11, %13 : vector<56x128xi32>
    %c0_10 = arith.constant 0 : index
    %c0_11 = arith.constant 0 : index
    %15 = vector.load %arg10[%c0_10, %c0_11] : memref<56x1xf32, #tpu.memory_space<vmem>>, vector<56x1xf32>
    %16 = vector.broadcast %10 : vector<56x1xi32> to vector<56x128xi32>
    %17 = arith.cmpi eq, %14, %16 : vector<56x128xi32>
    %cst_12 = arith.constant 0.000000e+00 : f32
    %18 = vector.broadcast %cst_12 : f32 to vector<56x128xf32>
    %19 = arith.select %17, %8, %18 : vector<56x128xi1>, vector<56x128xf32>
    %cst_13 = arith.constant dense<0.000000e+00> : vector<56xf32>
    %20 = vector.multi_reduction <add>, %19, %cst_13 [1] : vector<56x128xf32> to vector<56xf32>
    %21 = vector.shape_cast %20 : vector<56xf32> to vector<56x1xf32>
    %22 = arith.addf %15, %21 : vector<56x1xf32>
    %c0_14 = arith.constant 0 : index
    %c0_15 = arith.constant 0 : index
    %23 = vector.load %arg10[%c0_14, %c0_15] : memref<56x1xf32, #tpu.memory_space<vmem>>, vector<56x1xf32>
    tpu.vector_store %arg10[%c0_14, %c0_15], %22 {strides = array<i32>} : memref<56x1xf32, #tpu.memory_space<vmem>>, vector<56x1xf32>,
    %c0_16 = arith.constant 0 : index
    %c0_17 = arith.constant 0 : index
    %24 = vector.load %arg8[%c0_16, %c0_17] : memref<56x1xf32, #tpu.memory_space<vmem>>, vector<56x1xf32>
    %cst_18 = arith.constant dense<0xFF800000> : vector<56xf32>
    %25 = vector.multi_reduction <maximumf>, %8, %cst_18 [1] : vector<56x128xf32> to vector<56xf32>
    %26 = vector.shape_cast %25 : vector<56xf32> to vector<56x1xf32>
    %27 = arith.maximumf %24, %26 : vector<56x1xf32>
    %c0_19 = arith.constant 0 : index
    %c0_20 = arith.constant 0 : index
    %28 = vector.load %arg9[%c0_19, %c0_20] : memref<56x1xf32, #tpu.memory_space<vmem>>, vector<56x1xf32>
    %29 = arith.subf %24, %27 : vector<56x1xf32>
    %30 = math.exp %29 : vector<56x1xf32>
    %31 = arith.mulf %28, %30 : vector<56x1xf32>
    %32 = vector.broadcast %27 : vector<56x1xf32> to vector<56x128xf32>
    %33 = arith.subf %8, %32 : vector<56x128xf32>
    %34 = math.exp %33 : vector<56x128xf32>
    %cst_21 = arith.constant dense<0.000000e+00> : vector<56xf32>
    %35 = vector.multi_reduction <add>, %34, %cst_21 [1] : vector<56x128xf32> to vector<56xf32>
    %36 = vector.shape_cast %35 : vector<56xf32> to vector<56x1xf32>
    %37 = arith.addf %31, %36 : vector<56x1xf32>
    %c0_22 = arith.constant 0 : index
    %c0_23 = arith.constant 0 : index
    %38 = vector.load %arg9[%c0_22, %c0_23] : memref<56x1xf32, #tpu.memory_space<vmem>>, vector<56x1xf32>
    tpu.vector_store %arg9[%c0_22, %c0_23], %37 {strides = array<i32>} : memref<56x1xf32, #tpu.memory_space<vmem>>, vector<56x1xf32>,
    %c0_24 = arith.constant 0 : index
    %c0_25 = arith.constant 0 : index
    %39 = vector.load %arg8[%c0_24, %c0_25] : memref<56x1xf32, #tpu.memory_space<vmem>>, vector<56x1xf32>
    tpu.vector_store %arg8[%c0_24, %c0_25], %27 {strides = array<i32>} : memref<56x1xf32, #tpu.memory_space<vmem>>, vector<56x1xf32>,
    %c0_i32_26 = arith.constant 0 : i32
    %40 = arith.cmpi eq, %arg1, %c0_i32_26 : i32
    %41 = arith.extui %40 : i1 to i32
    %c0_i32_27 = arith.constant 0 : i32
    %42 = arith.cmpi ne, %41, %c0_i32_27 : i32
    scf.if %42 {
      %c0_28 = arith.constant 0 : index
      %c0_29 = arith.constant 0 : index
      %43 = vector.load %arg8[%c0_28, %c0_29] : memref<56x1xf32, #tpu.memory_space<vmem>>, vector<56x1xf32>
      %c0_30 = arith.constant 0 : index
      %c0_31 = arith.constant 0 : index
      %44 = vector.load %arg9[%c0_30, %c0_31] : memref<56x1xf32, #tpu.memory_space<vmem>>, vector<56x1xf32>
      %45 = math.log %44 : vector<56x1xf32>
      %46 = arith.addf %43, %45 : vector<56x1xf32>
      %c0_i32_32 = arith.constant 0 : i32
      %47 = vector.broadcast %c0_i32_32 : i32 to vector<56x1xi32>
      %48 = arith.cmpi ne, %10, %47 : vector<56x1xi32>
      %49 = arith.extui %48 : vector<56x1xi1> to vector<56x1xi32>
      %50 = arith.sitofp %49 : vector<56x1xi32> to vector<56x1xf32>
      %c0_33 = arith.constant 0 : index
      %c0_34 = arith.constant 0 : index
      %51 = vector.load %arg10[%c0_33, %c0_34] : memref<56x1xf32, #tpu.memory_space<vmem>>, vector<56x1xf32>
      %52 = arith.subf %46, %51 : vector<56x1xf32>
      %53 = arith.mulf %52, %50 : vector<56x1xf32>
      %c0_35 = arith.constant 0 : index
      %c0_36 = arith.constant 0 : index
      %54 = vector.load %arg7[%c0_35, %c0_36] : memref<56x1xf32, #tpu.memory_space<vmem>>, vector<56x1xf32>
      tpu.vector_store %arg7[%c0_35, %c0_36], %53 {strides = array<i32>} : memref<56x1xf32, #tpu.memory_space<vmem>>, vector<56x1xf32>,
    } else {
    }
    return
  }
  func.func @transform_0(%arg0: i32, %arg1: i32) -> (i32, i32) {
    %c0_i32 = arith.constant 0 : i32
    %c0_i32_0 = arith.constant 0 : i32
    return %arg0, %c0_i32 : i32, i32
  }
  func.func @transform_1(%arg0: i32, %arg1: i32) -> (i32, i32) {
    %c0_i32 = arith.constant 0 : i32
    %c0_i32_0 = arith.constant 0 : i32
    return %arg0, %c0_i32 : i32, i32
  }
  func.func @transform_2(%arg0: i32, %arg1: i32) -> (i32, i32) {
    %c0_i32 = arith.constant 0 : i32
    %c0_i32_0 = arith.constant 0 : i32
    return %c0_i32, %arg1 : i32, i32
  }
  func.func @transform_3(%arg0: i32, %arg1: i32) -> (i32, i32) {
    %c0_i32 = arith.constant 0 : i32
    %c0_i32_0 = arith.constant 0 : i32
    return %c0_i32, %arg1 : i32, i32
  }
  func.func @transform_4(%arg0: i32, %arg1: i32) -> (i32, i32) {
    %c0_i32 = arith.constant 0 : i32
    return %arg0, %arg1 : i32, i32
  }
  func.func @transform_5(%arg0: i32, %arg1: i32) -> (i32, i32) {
    %c0_i32 = arith.constant 0 : i32
    %c0_i32_0 = arith.constant 0 : i32
    return %arg0, %c0_i32 : i32, i32
  }
}

</mosaic_0001>

<llo_original>
// kernel: rnn_forward.3
$region0: #{rnn_forward.3}
  #allocation0 [shape = 'u32[]', space=smem, size = 0x4, offset = 0x4, fixed_abs, tag = 'smem constant byte address 0x4 - core index']
  #allocation1 [shape = 'u32[144,128]{1,0:T(1,128)}', space=vmem, size = 0x12000, scoped, tag = 'internal scratch']
  %s0 = inlined_call_operand.vmem [shape: f32[7,8,32], index: 0, kind: input, shape index: {}]
  %s1 = inlined_call_operand.vmem [shape: f32[32,32], index: 1, kind: input, shape index: {}]
  %s2 = inlined_call_operand.vmem [shape: f32[1,32], index: 2, kind: input, shape index: {}]
  %s3 = inlined_call_operand.vmem [shape: f32[7,8,32], index: 3, kind: output, shape index: {}]
  %s4 = sld [smem:[#allocation0]]
  $region22: #{rnn_forward.3} parent=0
    _
  %s6 = ssub.s32 1, %s4
  %s7 = scalar_select 0, %s6, %s4
  // Predicated region
  $region2: #{rnn_forward.3} parent=0 // pred_check
    _
  $region3: #{rnn_forward.3} parent=0 // pred_check_branch
    %9 = sbr.rel (0) target = $region5
  $region4: #{rnn_forward.3} parent=0 // pred_region
    _
  $region5: #{rnn_forward.3} parent=0 // pred_fallthru
    _
  // Predicated region
  $region6: #{rnn_forward.3} parent=0 // pred_check
    _
  $region7: #{rnn_forward.3} parent=0 // pred_check_branch
    %11 = sbr.rel (0) target = $region9
  $region8: #{rnn_forward.3} parent=0 // pred_region
    _
  $region9: #{rnn_forward.3} parent=0 // pred_fallthru
    _
  // Predicated region
  $region10: #{rnn_forward.3} parent=0 // pred_check
    _
  $region11: #{rnn_forward.3} parent=0 // pred_check_branch
    %13 = sbr.rel (0) target = $region13
  $region12: #{rnn_forward.3} parent=0 // pred_region
    _
  $region13: #{rnn_forward.3} parent=0 // pred_fallthru
    _
  %v14 = vld [vmem:[%s0] sm:$0xff]
  %v15 = vld [vmem:[%s0 + $0x8] sm:$0xff]
  %v16 = vld [vmem:[%s0 + $0x10] sm:$0xff]
  %v17 = vld [vmem:[%s0 + $0x18] sm:$0xff]
  %v18 = vld [vmem:[%s0 + $0x20] sm:$0xff]
  %v19 = vld [vmem:[%s0 + $0x28] sm:$0xff]
  %v20 = vld [vmem:[%s0 + $0x30] sm:$0xff]
  %v21 = vld [vmem:[%s1] sm:$0xff]
  %v22 = vld [vmem:[%s1 + $0x8] sm:$0xff]
  %v23 = vld [vmem:[%s1 + $0x10] sm:$0xff]
  %v24 = vld [vmem:[%s1 + $0x18] sm:$0xff]
  %v25 = vld [vmem:[%s2] sm:$0x1]
  %v27 = vlaneseq
  %v28 = vshrl.u32 %v27, 7
  %v29 = vsub.s32 0, %v28
  %v30 = vrot.slane %v25, %v29
  %vm32 = vcmask 261120
  %v34 = vsel %vm32, %v14, 0
  %v37 = vsel %vm32, %v15, 0
  %v40 = vsel %vm32, %v16, 0
  %v43 = vsel %vm32, %v17, 0
  %v46 = vsel %vm32, %v18, 0
  %v49 = vsel %vm32, %v19, 0
  %v52 = vsel %vm32, %v20, 0
  %54 = vmatprep.subr.mxu0 0.0
  %55 = vmatpush1.msra.mxu0 %v21
  %56 = vmatprep.subr.mxu0 0.0
  %57 = vmatpush1.msra.mxu0 %v22
  %58 = vmatprep.subr.mxu0 0.0
  %59 = vmatpush1.msra.mxu0 %v23
  %60 = vmatprep.subr.mxu0 0.0
  %61 = vmatpush1.msra.mxu0 %v24
  %62 = vmatprep.subr.mxu0 0.0
  %63 = vmatpush1.msra.mxu0 0.0
  %64 = vmatprep.subr.mxu0 0.0
  %65 = vmatpush1.msra.mxu0 0.0
  %66 = vmatprep.subr.mxu0 0.0
  %67 = vmatpush1.msra.mxu0 0.0
  %68 = vmatprep.subr.mxu0 0.0
  %69 = vmatpush1.msra.mxu0 0.0
  %70 = vmatprep.subr.mxu0 0.0
  %71 = vmatpush1.msra.mxu0 0.0
  %72 = vmatprep.subr.mxu0 0.0
  %73 = vmatpush1.msra.mxu0 0.0
  %74 = vmatprep.subr.mxu0 0.0
  %75 = vmatpush1.msra.mxu0 0.0
  %76 = vmatprep.subr.mxu0 0.0
  %77 = vmatpush1.msra.mxu0 0.0
  %78 = vmatprep.subr.mxu0 0.0
  %79 = vmatpush1.msra.mxu0 0.0
  %80 = vmatprep.subr.mxu0 0.0
  %81 = vmatpush1.msra.mxu0 0.0
  %82 = vmatprep.subr.mxu0 0.0
  %83 = vmatpush1.msra.mxu0 0.0
  %84 = vmatprep.subr.mxu0 0.0
  %85 = vmatpush1.msra.mxu0 0.0
  %86 = vmatprep.subr.mxu0 0.0
  %87 = vmatpush1.msra.mxu0 0.0
  %88 = vmatprep.subr.mxu0 0.0
  %89 = vmatpush1.msra.mxu0 0.0
  %90 = vmatprep.subr.mxu0 0.0
  %91 = vmatpush1.msra.mxu0 0.0
  %92 = vmatprep.subr.mxu0 0.0
  %93 = vmatpush1.msra.mxu0 0.0
  %94 = vmatprep.subr.mxu0 0.0
  %95 = vmatpush1.msra.mxu0 0.0
  %96 = vmatprep.subr.mxu0 0.0
  %97 = vmatpush1.msra.mxu0 0.0
  %98 = vmatprep.subr.mxu0 0.0
  %99 = vmatpush1.msra.mxu0 0.0
  %100 = vmatprep.subr.mxu0 0.0
  %101 = vmatpush1.msra.mxu0 0.0
  %102 = vmatprep.subr.mxu0 0.0
  %103 = vmatpush1.msra.mxu0 0.0
  %104 = vmatprep.subr.mxu0 0.0
  %105 = vmatpush1.msra.mxu0 0.0
  %106 = vmatprep.subr.mxu0 0.0
  %107 = vmatpush1.msra.mxu0 0.0
  %108 = vmatprep.subr.mxu0 0.0
  %109 = vmatpush1.msra.mxu0 0.0
  %110 = vmatprep.subr.mxu0 0.0
  %111 = vmatpush1.msra.mxu0 0.0
  %112 = vmatprep.subr.mxu0 0.0
  %113 = vmatpush1.msra.mxu0 0.0
  %114 = vmatprep.subr.mxu0 0.0
  %115 = vmatpush1.msra.mxu0 0.0
  %116 = vmatprep.subr.mxu0 0.0
  %117 = vmatpush1.msra.mxu0 0.0
  %118 = vmatprep.mubr.f32.mxu0 0.0
  %119 = vmatmul.mubr.f32.gmra.mrb[0].mxu0 %v34
  %v120 = vpop.f32.mrb[0].mxu0
  %v121 = vadd.f32 %v30, %v120
  %v122 = vpop.f32.mrb[0].mxu0
  %123 = vmatprep.mubr.f32.mxu0 0.0
  %124 = vmatmul.mubr.f32.gmra.mrb[0].mxu0 %v37
  %v125 = vpop.f32.mrb[0].mxu0
  %v126 = vadd.f32 %v30, %v125
  %v127 = vpop.f32.mrb[0].mxu0
  %128 = vmatprep.mubr.f32.mxu0 0.0
  %129 = vmatmul.mubr.f32.gmra.mrb[0].mxu0 %v40
  %v130 = vpop.f32.mrb[0].mxu0
  %v131 = vadd.f32 %v30, %v130
  %v132 = vpop.f32.mrb[0].mxu0
  %133 = vmatprep.mubr.f32.mxu0 0.0
  %134 = vmatmul.mubr.f32.gmra.mrb[0].mxu0 %v43
  %v135 = vpop.f32.mrb[0].mxu0
  %v136 = vadd.f32 %v30, %v135
  %v137 = vpop.f32.mrb[0].mxu0
  %138 = vmatprep.mubr.f32.mxu0 0.0
  %139 = vmatmul.mubr.f32.gmra.mrb[0].mxu0 %v46
  %v140 = vpop.f32.mrb[0].mxu0
  %v141 = vadd.f32 %v30, %v140
  %v142 = vpop.f32.mrb[0].mxu0
  %143 = vmatprep.mubr.f32.mxu0 0.0
  %144 = vmatmul.mubr.f32.gmra.mrb[0].mxu0 %v49
  %v145 = vpop.f32.mrb[0].mxu0
  %v146 = vadd.f32 %v30, %v145
  %v147 = vpop.f32.mrb[0].mxu0
  %148 = vmatprep.mubr.f32.mxu0 0.0
  %149 = vmatmul.mubr.f32.gmra.mrb[0].mxu0 %v52
  %v150 = vpop.f32.mrb[0].mxu0
  %v151 = vadd.f32 %v30, %v150
  %v152 = vpop.f32.mrb[0].mxu0
  %153 = vdwg.mxu0
  %154 = vst.msk [vmem:[%s3] sm:$0xff] %vm32, %v121
  %155 = vst.msk [vmem:[%s3 + $0x8] sm:$0xff] %vm32, %v126
  %156 = vst.msk [vmem:[%s3 + $0x10] sm:$0xff] %vm32, %v131
  %157 = vst.msk [vmem:[%s3 + $0x18] sm:$0xff] %vm32, %v136
  %158 = vst.msk [vmem:[%s3 + $0x20] sm:$0xff] %vm32, %v141
  %159 = vst.msk [vmem:[%s3 + $0x28] sm:$0xff] %vm32, %v146
  %160 = vst.msk [vmem:[%s3 + $0x30] sm:$0xff] %vm32, %v151
  // Predicated region
  $region14: #{rnn_forward.3} parent=0 // pred_check
    _
  $region15: #{rnn_forward.3} parent=0 // pred_check_branch
    %162 = sbr.rel (0) target = $region17
  $region16: #{rnn_forward.3} parent=0 // pred_region
    _
  $region17: #{rnn_forward.3} parent=0 // pred_fallthru
    _
  // Predicated region
  $region18: #{rnn_forward.3} parent=0 // pred_check
    _
  $region19: #{rnn_forward.3} parent=0 // pred_check_branch
    %164 = sbr.rel (0) target = $region21
  $region20: #{rnn_forward.3} parent=0 // pred_region
    _
  $region21: #{rnn_forward.3} parent=0 // pred_fallthru
    _

// kernel: rnn_forward.4
$region0: #{rnn_forward.4}
  #allocation0 [shape = 'u32[]', space=smem, size = 0x4, offset = 0x4, fixed_abs, tag = 'smem constant byte address 0x4 - core index']
  #allocation1 [shape = 'u32[144,128]{1,0:T(1,128)}', space=vmem, size = 0x12000, scoped, tag = 'internal scratch']
  #allocation2 [shape = 'f32[8,32]{1,0:T(8,128)}', space=vmem, size = 0x1000, scoped, tag = 'scratch operand']
  %s0 = inlined_call_operand.vmem [shape: f32[7,8,32], index: 0, kind: input, shape index: {}]
  %s1 = inlined_call_operand.vmem [shape: f32[32,32], index: 1, kind: input, shape index: {}]
  %s2 = inlined_call_operand.vmem [shape: f32[7,8,32], index: 2, kind: output, shape index: {}]
  %s3 = sld [smem:[#allocation0]]
  $region22: #{rnn_forward.4} parent=0
    _
  %s5 = ssub.s32 1, %s3
  %s6 = scalar_select 0, %s5, %s3
  // Predicated region
  $region2: #{rnn_forward.4} parent=0 // pred_check
    _
  $region3: #{rnn_forward.4} parent=0 // pred_check_branch
    %8 = sbr.rel (0) target = $region5
  $region4: #{rnn_forward.4} parent=0 // pred_region
    _
  $region5: #{rnn_forward.4} parent=0 // pred_fallthru
    _
  // Predicated region
  $region6: #{rnn_forward.4} parent=0 // pred_check
    _
  $region7: #{rnn_forward.4} parent=0 // pred_check_branch
    %10 = sbr.rel (0) target = $region9
  $region8: #{rnn_forward.4} parent=0 // pred_region
    _
  $region9: #{rnn_forward.4} parent=0 // pred_fallthru
    _
  %p11 = scmp.eq.s32.totalorder 0, 0
  // Predicated region
  $region10: #{rnn_forward.4} parent=0 // pred_check
    %p12 = pneg %p11
  $region11: #{rnn_forward.4} parent=0 // pred_check_branch
    %14 = sbr.rel (%p12) target = $region13
  $region12: #{rnn_forward.4} parent=0 // pred_region
    %vm15 = vcmask 261120
    %16 = vst.msk [vmem:[#allocation2] sm:$0xff] %vm15, 0.0
  $region13: #{rnn_forward.4} parent=0 // pred_fallthru
    _
  %v17 = vld [vmem:[%s1] sm:$0xff]
  %v18 = vld [vmem:[%s1 + $0x8] sm:$0xff]
  %v19 = vld [vmem:[%s1 + $0x10] sm:$0xff]
  %v20 = vld [vmem:[%s1 + $0x18] sm:$0xff]
  %v21 = vld [vmem:[#allocation2] sm:$0xff]
  %v22 = vld [vmem:[%s0] sm:$0xff]
  %vm23 = vcmask 261120
  %v25 = vsel %vm23, %v21, 0
  %27 = vmatprep.subr.mxu0 0.0
  %28 = vmatpush1.msra.mxu0 %v17
  %29 = vmatprep.subr.mxu0 0.0
  %30 = vmatpush1.msra.mxu0 %v18
  %31 = vmatprep.subr.mxu0 0.0
  %32 = vmatpush1.msra.mxu0 %v19
  %33 = vmatprep.subr.mxu0 0.0
  %34 = vmatpush1.msra.mxu0 %v20
  %35 = vmatprep.subr.mxu0 0.0
  %36 = vmatpush1.msra.mxu0 0.0
  %37 = vmatprep.subr.mxu0 0.0
  %38 = vmatpush1.msra.mxu0 0.0
  %39 = vmatprep.subr.mxu0 0.0
  %40 = vmatpush1.msra.mxu0 0.0
  %41 = vmatprep.subr.mxu0 0.0
  %42 = vmatpush1.msra.mxu0 0.0
  %43 = vmatprep.subr.mxu0 0.0
  %44 = vmatpush1.msra.mxu0 0.0
  %45 = vmatprep.subr.mxu0 0.0
  %46 = vmatpush1.msra.mxu0 0.0
  %47 = vmatprep.subr.mxu0 0.0
  %48 = vmatpush1.msra.mxu0 0.0
  %49 = vmatprep.subr.mxu0 0.0
  %50 = vmatpush1.msra.mxu0 0.0
  %51 = vmatprep.subr.mxu0 0.0
  %52 = vmatpush1.msra.mxu0 0.0
  %53 = vmatprep.subr.mxu0 0.0
  %54 = vmatpush1.msra.mxu0 0.0
  %55 = vmatprep.subr.mxu0 0.0
  %56 = vmatpush1.msra.mxu0 0.0
  %57 = vmatprep.subr.mxu0 0.0
  %58 = vmatpush1.msra.mxu0 0.0
  %59 = vmatprep.subr.mxu0 0.0
  %60 = vmatpush1.msra.mxu0 0.0
  %61 = vmatprep.subr.mxu0 0.0
  %62 = vmatpush1.msra.mxu0 0.0
  %63 = vmatprep.subr.mxu0 0.0
  %64 = vmatpush1.msra.mxu0 0.0
  %65 = vmatprep.subr.mxu0 0.0
  %66 = vmatpush1.msra.mxu0 0.0
  %67 = vmatprep.subr.mxu0 0.0
  %68 = vmatpush1.msra.mxu0 0.0
  %69 = vmatprep.subr.mxu0 0.0
  %70 = vmatpush1.msra.mxu0 0.0
  %71 = vmatprep.subr.mxu0 0.0
  %72 = vmatpush1.msra.mxu0 0.0
  %73 = vmatprep.subr.mxu0 0.0
  %74 = vmatpush1.msra.mxu0 0.0
  %75 = vmatprep.subr.mxu0 0.0
  %76 = vmatpush1.msra.mxu0 0.0
  %77 = vmatprep.subr.mxu0 0.0
  %78 = vmatpush1.msra.mxu0 0.0
  %79 = vmatprep.subr.mxu0 0.0
  %80 = vmatpush1.msra.mxu0 0.0
  %81 = vmatprep.subr.mxu0 0.0
  %82 = vmatpush1.msra.mxu0 0.0
  %83 = vmatprep.subr.mxu0 0.0
  %84 = vmatpush1.msra.mxu0 0.0
  %85 = vmatprep.subr.mxu0 0.0
  %86 = vmatpush1.msra.mxu0 0.0
  %87 = vmatprep.subr.mxu0 0.0
  %88 = vmatpush1.msra.mxu0 0.0
  %89 = vmatprep.subr.mxu0 0.0
  %90 = vmatpush1.msra.mxu0 0.0
  %91 = vmatprep.mubr.f32.mxu0 0.0
  %92 = vmatmul.mubr.f32.gmra.mrb[0].mxu0 %v25
  %v93 = vpop.f32.mrb[0].mxu0
  %v94 = vadd.f32 0.0, %v93
  %v95 = vpop.f32.mrb[0].mxu0
  %96 = vdwg.mxu0
  %v97 = vadd.f32 %v22, %v94
  %v98 = vtanh.pop %v97
  %99 = vst.msk [vmem:[%s2] sm:$0xff] %vm23, %v98
  %s100 = scalar_lea.vmem %s0, 8
  %v101 = vld [vmem:[%s100] sm:$0xff]
  %v103 = vsel %vm23, %v98, 0
  %105 = vmatprep.subr.mxu0 0.0
  %106 = vmatpush1.msra.mxu0 %v17
  %107 = vmatprep.subr.mxu0 0.0
  %108 = vmatpush1.msra.mxu0 %v18
  %109 = vmatprep.subr.mxu0 0.0
  %110 = vmatpush1.msra.mxu0 %v19
  %111 = vmatprep.subr.mxu0 0.0
  %112 = vmatpush1.msra.mxu0 %v20
  %113 = vmatprep.subr.mxu0 0.0
  %114 = vmatpush1.msra.mxu0 0.0
  %115 = vmatprep.subr.mxu0 0.0
  %116 = vmatpush1.msra.mxu0 0.0
  %117 = vmatprep.subr.mxu0 0.0
  %118 = vmatpush1.msra.mxu0 0.0
  %119 = vmatprep.subr.mxu0 0.0
  %120 = vmatpush1.msra.mxu0 0.0
  %121 = vmatprep.subr.mxu0 0.0
  %122 = vmatpush1.msra.mxu0 0.0
  %123 = vmatprep.subr.mxu0 0.0
  %124 = vmatpush1.msra.mxu0 0.0
  %125 = vmatprep.subr.mxu0 0.0
  %126 = vmatpush1.msra.mxu0 0.0
  %127 = vmatprep.subr.mxu0 0.0
  %128 = vmatpush1.msra.mxu0 0.0
  %129 = vmatprep.subr.mxu0 0.0
  %130 = vmatpush1.msra.mxu0 0.0
  %131 = vmatprep.subr.mxu0 0.0
  %132 = vmatpush1.msra.mxu0 0.0
  %133 = vmatprep.subr.mxu0 0.0
  %134 = vmatpush1.msra.mxu0 0.0
  %135 = vmatprep.subr.mxu0 0.0
  %136 = vmatpush1.msra.mxu0 0.0
  %137 = vmatprep.subr.mxu0 0.0
  %138 = vmatpush1.msra.mxu0 0.0
  %139 = vmatprep.subr.mxu0 0.0
  %140 = vmatpush1.msra.mxu0 0.0
  %141 = vmatprep.subr.mxu0 0.0
  %142 = vmatpush1.msra.mxu0 0.0
  %143 = vmatprep.subr.mxu0 0.0
  %144 = vmatpush1.msra.mxu0 0.0
  %145 = vmatprep.subr.mxu0 0.0
  %146 = vmatpush1.msra.mxu0 0.0
  %147 = vmatprep.subr.mxu0 0.0
  %148 = vmatpush1.msra.mxu0 0.0
  %149 = vmatprep.subr.mxu0 0.0
  %150 = vmatpush1.msra.mxu0 0.0
  %151 = vmatprep.subr.mxu0 0.0
  %152 = vmatpush1.msra.mxu0 0.0
  %153 = vmatprep.subr.mxu0 0.0
  %154 = vmatpush1.msra.mxu0 0.0
  %155 = vmatprep.subr.mxu0 0.0
  %156 = vmatpush1.msra.mxu0 0.0
  %157 = vmatprep.subr.mxu0 0.0
  %158 = vmatpush1.msra.mxu0 0.0
  %159 = vmatprep.subr.mxu0 0.0
  %160 = vmatpush1.msra.mxu0 0.0
  %161 = vmatprep.subr.mxu0 0.0
  %162 = vmatpush1.msra.mxu0 0.0
  %163 = vmatprep.subr.mxu0 0.0
  %164 = vmatpush1.msra.mxu0 0.0
  %165 = vmatprep.subr.mxu0 0.0
  %166 = vmatpush1.msra.mxu0 0.0
  %167 = vmatprep.subr.mxu0 0.0
  %168 = vmatpush1.msra.mxu0 0.0
  %169 = vmatprep.mubr.f32.mxu0 0.0
  %170 = vmatmul.mubr.f32.gmra.mrb[0].mxu0 %v103
  %v171 = vpop.f32.mrb[0].mxu0
  %v172 = vadd.f32 0.0, %v171
  %v173 = vpop.f32.mrb[0].mxu0
  %174 = vdwg.mxu0
  %v175 = vadd.f32 %v101, %v172
  %v176 = vtanh.pop %v175
  %s177 = scalar_lea.vmem %s2, 8
  %178 = vst.msk [vmem:[%s177] sm:$0xff] %vm23, %v176
  %s179 = scalar_lea.vmem %s0, 16
  %v180 = vld [vmem:[%s179] sm:$0xff]
  %v182 = vsel %vm23, %v176, 0
  %184 = vmatprep.subr.mxu0 0.0
  %185 = vmatpush1.msra.mxu0 %v17
  %186 = vmatprep.subr.mxu0 0.0
  %187 = vmatpush1.msra.mxu0 %v18
  %188 = vmatprep.subr.mxu0 0.0
  %189 = vmatpush1.msra.mxu0 %v19
  %190 = vmatprep.subr.mxu0 0.0
  %191 = vmatpush1.msra.mxu0 %v20
  %192 = vmatprep.subr.mxu0 0.0
  %193 = vmatpush1.msra.mxu0 0.0
  %194 = vmatprep.subr.mxu0 0.0
  %195 = vmatpush1.msra.mxu0 0.0
  %196 = vmatprep.subr.mxu0 0.0
  %197 = vmatpush1.msra.mxu0 0.0
  %198 = vmatprep.subr.mxu0 0.0
  %199 = vmatpush1.msra.mxu0 0.0
  %200 = vmatprep.subr.mxu0 0.0
  %201 = vmatpush1.msra.mxu0 0.0
  %202 = vmatprep.subr.mxu0 0.0
  %203 = vmatpush1.msra.mxu0 0.0
  %204 = vmatprep.subr.mxu0 0.0
  %205 = vmatpush1.msra.mxu0 0.0
  %206 = vmatprep.subr.mxu0 0.0
  %207 = vmatpush1.msra.mxu0 0.0
  %208 = vmatprep.subr.mxu0 0.0
  %209 = vmatpush1.msra.mxu0 0.0
  %210 = vmatprep.subr.mxu0 0.0
  %211 = vmatpush1.msra.mxu0 0.0
  %212 = vmatprep.subr.mxu0 0.0
  %213 = vmatpush1.msra.mxu0 0.0
  %214 = vmatprep.subr.mxu0 0.0
  %215 = vmatpush1.msra.mxu0 0.0
  %216 = vmatprep.subr.mxu0 0.0
  %217 = vmatpush1.msra.mxu0 0.0
  %218 = vmatprep.subr.mxu0 0.0
  %219 = vmatpush1.msra.mxu0 0.0
  %220 = vmatprep.subr.mxu0 0.0
  %221 = vmatpush1.msra.mxu0 0.0
  %222 = vmatprep.subr.mxu0 0.0
  %223 = vmatpush1.msra.mxu0 0.0
  %224 = vmatprep.subr.mxu0 0.0
  %225 = vmatpush1.msra.mxu0 0.0
  %226 = vmatprep.subr.mxu0 0.0
  %227 = vmatpush1.msra.mxu0 0.0
  %228 = vmatprep.subr.mxu0 0.0
  %229 = vmatpush1.msra.mxu0 0.0
  %230 = vmatprep.subr.mxu0 0.0
  %231 = vmatpush1.msra.mxu0 0.0
  %232 = vmatprep.subr.mxu0 0.0
  %233 = vmatpush1.msra.mxu0 0.0
  %234 = vmatprep.subr.mxu0 0.0
  %235 = vmatpush1.msra.mxu0 0.0
  %236 = vmatprep.subr.mxu0 0.0
  %237 = vmatpush1.msra.mxu0 0.0
  %238 = vmatprep.subr.mxu0 0.0
  %239 = vmatpush1.msra.mxu0 0.0
  %240 = vmatprep.subr.mxu0 0.0
  %241 = vmatpush1.msra.mxu0 0.0
  %242 = vmatprep.subr.mxu0 0.0
  %243 = vmatpush1.msra.mxu0 0.0
  %244 = vmatprep.subr.mxu0 0.0
  %245 = vmatpush1.msra.mxu0 0.0
  %246 = vmatprep.subr.mxu0 0.0
  %247 = vmatpush1.msra.mxu0 0.0
  %248 = vmatprep.mubr.f32.mxu0 0.0
  %249 = vmatmul.mubr.f32.gmra.mrb[0].mxu0 %v182
  %v250 = vpop.f32.mrb[0].mxu0
  %v251 = vadd.f32 0.0, %v250
  %v252 = vpop.f32.mrb[0].mxu0
  %253 = vdwg.mxu0
  %v254 = vadd.f32 %v180, %v251
  %v255 = vtanh.pop %v254
  %s256 = scalar_lea.vmem %s2, 16
  %257 = vst.msk [vmem:[%s256] sm:$0xff] %vm23, %v255
  %s258 = scalar_lea.vmem %s0, 24
  %v259 = vld [vmem:[%s258] sm:$0xff]
  %v261 = vsel %vm23, %v255, 0
  %263 = vmatprep.subr.mxu0 0.0
  %264 = vmatpush1.msra.mxu0 %v17
  %265 = vmatprep.subr.mxu0 0.0
  %266 = vmatpush1.msra.mxu0 %v18
  %267 = vmatprep.subr.mxu0 0.0
  %268 = vmatpush1.msra.mxu0 %v19
  %269 = vmatprep.subr.mxu0 0.0
  %270 = vmatpush1.msra.mxu0 %v20
  %271 = vmatprep.subr.mxu0 0.0
  %272 = vmatpush1.msra.mxu0 0.0
  %273 = vmatprep.subr.mxu0 0.0
  %274 = vmatpush1.msra.mxu0 0.0
  %275 = vmatprep.subr.mxu0 0.0
  %276 = vmatpush1.msra.mxu0 0.0
  %277 = vmatprep.subr.mxu0 0.0
  %278 = vmatpush1.msra.mxu0 0.0
  %279 = vmatprep.subr.mxu0 0.0
  %280 = vmatpush1.msra.mxu0 0.0
  %281 = vmatprep.subr.mxu0 0.0
  %282 = vmatpush1.msra.mxu0 0.0
  %283 = vmatprep.subr.mxu0 0.0
  %284 = vmatpush1.msra.mxu0 0.0
  %285 = vmatprep.subr.mxu0 0.0
  %286 = vmatpush1.msra.mxu0 0.0
  %287 = vmatprep.subr.mxu0 0.0
  %288 = vmatpush1.msra.mxu0 0.0
  %289 = vmatprep.subr.mxu0 0.0
  %290 = vmatpush1.msra.mxu0 0.0
  %291 = vmatprep.subr.mxu0 0.0
  %292 = vmatpush1.msra.mxu0 0.0
  %293 = vmatprep.subr.mxu0 0.0
  %294 = vmatpush1.msra.mxu0 0.0
  %295 = vmatprep.subr.mxu0 0.0
  %296 = vmatpush1.msra.mxu0 0.0
  %297 = vmatprep.subr.mxu0 0.0
  %298 = vmatpush1.msra.mxu0 0.0
  %299 = vmatprep.subr.mxu0 0.0
  %300 = vmatpush1.msra.mxu0 0.0
  %301 = vmatprep.subr.mxu0 0.0
  %302 = vmatpush1.msra.mxu0 0.0
  %303 = vmatprep.subr.mxu0 0.0
  %304 = vmatpush1.msra.mxu0 0.0
  %305 = vmatprep.subr.mxu0 0.0
  %306 = vmatpush1.msra.mxu0 0.0
  %307 = vmatprep.subr.mxu0 0.0
  %308 = vmatpush1.msra.mxu0 0.0
  %309 = vmatprep.subr.mxu0 0.0
  %310 = vmatpush1.msra.mxu0 0.0
  %311 = vmatprep.subr.mxu0 0.0
  %312 = vmatpush1.msra.mxu0 0.0
  %313 = vmatprep.subr.mxu0 0.0
  %314 = vmatpush1.msra.mxu0 0.0
  %315 = vmatprep.subr.mxu0 0.0
  %316 = vmatpush1.msra.mxu0 0.0
  %317 = vmatprep.subr.mxu0 0.0
  %318 = vmatpush1.msra.mxu0 0.0
  %319 = vmatprep.subr.mxu0 0.0
  %320 = vmatpush1.msra.mxu0 0.0
  %321 = vmatprep.subr.mxu0 0.0
  %322 = vmatpush1.msra.mxu0 0.0
  %323 = vmatprep.subr.mxu0 0.0
  %324 = vmatpush1.msra.mxu0 0.0
  %325 = vmatprep.subr.mxu0 0.0
  %326 = vmatpush1.msra.mxu0 0.0
  %327 = vmatprep.mubr.f32.mxu0 0.0
  %328 = vmatmul.mubr.f32.gmra.mrb[0].mxu0 %v261
  %v329 = vpop.f32.mrb[0].mxu0
  %v330 = vadd.f32 0.0, %v329
  %v331 = vpop.f32.mrb[0].mxu0
  %332 = vdwg.mxu0
  %v333 = vadd.f32 %v259, %v330
  %v334 = vtanh.pop %v333
  %s335 = scalar_lea.vmem %s2, 24
  %336 = vst.msk [vmem:[%s335] sm:$0xff] %vm23, %v334
  %s337 = scalar_lea.vmem %s0, 32
  %v338 = vld [vmem:[%s337] sm:$0xff]
  %v340 = vsel %vm23, %v334, 0
  %342 = vmatprep.subr.mxu0 0.0
  %343 = vmatpush1.msra.mxu0 %v17
  %344 = vmatprep.subr.mxu0 0.0
  %345 = vmatpush1.msra.mxu0 %v18
  %346 = vmatprep.subr.mxu0 0.0
  %347 = vmatpush1.msra.mxu0 %v19
  %348 = vmatprep.subr.mxu0 0.0
  %349 = vmatpush1.msra.mxu0 %v20
  %350 = vmatprep.subr.mxu0 0.0
  %351 = vmatpush1.msra.mxu0 0.0
  %352 = vmatprep.subr.mxu0 0.0
  %353 = vmatpush1.msra.mxu0 0.0
  %354 = vmatprep.subr.mxu0 0.0
  %355 = vmatpush1.msra.mxu0 0.0
  %356 = vmatprep.subr.mxu0 0.0
  %357 = vmatpush1.msra.mxu0 0.0
  %358 = vmatprep.subr.mxu0 0.0
  %359 = vmatpush1.msra.mxu0 0.0
  %360 = vmatprep.subr.mxu0 0.0
  %361 = vmatpush1.msra.mxu0 0.0
  %362 = vmatprep.subr.mxu0 0.0
  %363 = vmatpush1.msra.mxu0 0.0
  %364 = vmatprep.subr.mxu0 0.0
  %365 = vmatpush1.msra.mxu0 0.0
  %366 = vmatprep.subr.mxu0 0.0
  %367 = vmatpush1.msra.mxu0 0.0
  %368 = vmatprep.subr.mxu0 0.0
  %369 = vmatpush1.msra.mxu0 0.0
  %370 = vmatprep.subr.mxu0 0.0
  %371 = vmatpush1.msra.mxu0 0.0
  %372 = vmatprep.subr.mxu0 0.0
  %373 = vmatpush1.msra.mxu0 0.0
  %374 = vmatprep.subr.mxu0 0.0
  %375 = vmatpush1.msra.mxu0 0.0
  %376 = vmatprep.subr.mxu0 0.0
  %377 = vmatpush1.msra.mxu0 0.0
  %378 = vmatprep.subr.mxu0 0.0
  %379 = vmatpush1.msra.mxu0 0.0
  %380 = vmatprep.subr.mxu0 0.0
  %381 = vmatpush1.msra.mxu0 0.0
  %382 = vmatprep.subr.mxu0 0.0
  %383 = vmatpush1.msra.mxu0 0.0
  %384 = vmatprep.subr.mxu0 0.0
  %385 = vmatpush1.msra.mxu0 0.0
  %386 = vmatprep.subr.mxu0 0.0
  %387 = vmatpush1.msra.mxu0 0.0
  %388 = vmatprep.subr.mxu0 0.0
  %389 = vmatpush1.msra.mxu0 0.0
  %390 = vmatprep.subr.mxu0 0.0
  %391 = vmatpush1.msra.mxu0 0.0
  %392 = vmatprep.subr.mxu0 0.0
  %393 = vmatpush1.msra.mxu0 0.0
  %394 = vmatprep.subr.mxu0 0.0
  %395 = vmatpush1.msra.mxu0 0.0
  %396 = vmatprep.subr.mxu0 0.0
  %397 = vmatpush1.msra.mxu0 0.0
  %398 = vmatprep.subr.mxu0 0.0
  %399 = vmatpush1.msra.mxu0 0.0
  %400 = vmatprep.subr.mxu0 0.0
  %401 = vmatpush1.msra.mxu0 0.0
  %402 = vmatprep.subr.mxu0 0.0
  %403 = vmatpush1.msra.mxu0 0.0
  %404 = vmatprep.subr.mxu0 0.0
  %405 = vmatpush1.msra.mxu0 0.0
  %406 = vmatprep.mubr.f32.mxu0 0.0
  %407 = vmatmul.mubr.f32.gmra.mrb[0].mxu0 %v340
  %v408 = vpop.f32.mrb[0].mxu0
  %v409 = vadd.f32 0.0, %v408
  %v410 = vpop.f32.mrb[0].mxu0
  %411 = vdwg.mxu0
  %v412 = vadd.f32 %v338, %v409
  %v413 = vtanh.pop %v412
  %s414 = scalar_lea.vmem %s2, 32
  %415 = vst.msk [vmem:[%s414] sm:$0xff] %vm23, %v413
  %s416 = scalar_lea.vmem %s0, 40
  %v417 = vld [vmem:[%s416] sm:$0xff]
  %v419 = vsel %vm23, %v413, 0
  %421 = vmatprep.subr.mxu0 0.0
  %422 = vmatpush1.msra.mxu0 %v17
  %423 = vmatprep.subr.mxu0 0.0
  %424 = vmatpush1.msra.mxu0 %v18
  %425 = vmatprep.subr.mxu0 0.0
  %426 = vmatpush1.msra.mxu0 %v19
  %427 = vmatprep.subr.mxu0 0.0
  %428 = vmatpush1.msra.mxu0 %v20
  %429 = vmatprep.subr.mxu0 0.0
  %430 = vmatpush1.msra.mxu0 0.0
  %431 = vmatprep.subr.mxu0 0.0
  %432 = vmatpush1.msra.mxu0 0.0
  %433 = vmatprep.subr.mxu0 0.0
  %434 = vmatpush1.msra.mxu0 0.0
  %435 = vmatprep.subr.mxu0 0.0
  %436 = vmatpush1.msra.mxu0 0.0
  %437 = vmatprep.subr.mxu0 0.0
  %438 = vmatpush1.msra.mxu0 0.0
  %439 = vmatprep.subr.mxu0 0.0
  %440 = vmatpush1.msra.mxu0 0.0
  %441 = vmatprep.subr.mxu0 0.0
  %442 = vmatpush1.msra.mxu0 0.0
  %443 = vmatprep.subr.mxu0 0.0
  %444 = vmatpush1.msra.mxu0 0.0
  %445 = vmatprep.subr.mxu0 0.0
  %446 = vmatpush1.msra.mxu0 0.0
  %447 = vmatprep.subr.mxu0 0.0
  %448 = vmatpush1.msra.mxu0 0.0
  %449 = vmatprep.subr.mxu0 0.0
  %450 = vmatpush1.msra.mxu0 0.0
  %451 = vmatprep.subr.mxu0 0.0
  %452 = vmatpush1.msra.mxu0 0.0
  %453 = vmatprep.subr.mxu0 0.0
  %454 = vmatpush1.msra.mxu0 0.0
  %455 = vmatprep.subr.mxu0 0.0
  %456 = vmatpush1.msra.mxu0 0.0
  %457 = vmatprep.subr.mxu0 0.0
  %458 = vmatpush1.msra.mxu0 0.0
  %459 = vmatprep.subr.mxu0 0.0
  %460 = vmatpush1.msra.mxu0 0.0
  %461 = vmatprep.subr.mxu0 0.0
  %462 = vmatpush1.msra.mxu0 0.0
  %463 = vmatprep.subr.mxu0 0.0
  %464 = vmatpush1.msra.mxu0 0.0
  %465 = vmatprep.subr.mxu0 0.0
  %466 = vmatpush1.msra.mxu0 0.0
  %467 = vmatprep.subr.mxu0 0.0
  %468 = vmatpush1.msra.mxu0 0.0
  %469 = vmatprep.subr.mxu0 0.0
  %470 = vmatpush1.msra.mxu0 0.0
  %471 = vmatprep.subr.mxu0 0.0
  %472 = vmatpush1.msra.mxu0 0.0
  %473 = vmatprep.subr.mxu0 0.0
  %474 = vmatpush1.msra.mxu0 0.0
  %475 = vmatprep.subr.mxu0 0.0
  %476 = vmatpush1.msra.mxu0 0.0
  %477 = vmatprep.subr.mxu0 0.0
  %478 = vmatpush1.msra.mxu0 0.0
  %479 = vmatprep.subr.mxu0 0.0
  %480 = vmatpush1.msra.mxu0 0.0
  %481 = vmatprep.subr.mxu0 0.0
  %482 = vmatpush1.msra.mxu0 0.0
  %483 = vmatprep.subr.mxu0 0.0
  %484 = vmatpush1.msra.mxu0 0.0
  %485 = vmatprep.mubr.f32.mxu0 0.0
  %486 = vmatmul.mubr.f32.gmra.mrb[0].mxu0 %v419
  %v487 = vpop.f32.mrb[0].mxu0
  %v488 = vadd.f32 0.0, %v487
  %v489 = vpop.f32.mrb[0].mxu0
  %490 = vdwg.mxu0
  %v491 = vadd.f32 %v417, %v488
  %v492 = vtanh.pop %v491
  %s493 = scalar_lea.vmem %s2, 40
  %494 = vst.msk [vmem:[%s493] sm:$0xff] %vm23, %v492
  %s495 = scalar_lea.vmem %s0, 48
  %v496 = vld [vmem:[%s495] sm:$0xff]
  %v498 = vsel %vm23, %v492, 0
  %500 = vmatprep.subr.mxu0 0.0
  %501 = vmatpush1.msra.mxu0 %v17
  %502 = vmatprep.subr.mxu0 0.0
  %503 = vmatpush1.msra.mxu0 %v18
  %504 = vmatprep.subr.mxu0 0.0
  %505 = vmatpush1.msra.mxu0 %v19
  %506 = vmatprep.subr.mxu0 0.0
  %507 = vmatpush1.msra.mxu0 %v20
  %508 = vmatprep.subr.mxu0 0.0
  %509 = vmatpush1.msra.mxu0 0.0
  %510 = vmatprep.subr.mxu0 0.0
  %511 = vmatpush1.msra.mxu0 0.0
  %512 = vmatprep.subr.mxu0 0.0
  %513 = vmatpush1.msra.mxu0 0.0
  %514 = vmatprep.subr.mxu0 0.0
  %515 = vmatpush1.msra.mxu0 0.0
  %516 = vmatprep.subr.mxu0 0.0
  %517 = vmatpush1.msra.mxu0 0.0
  %518 = vmatprep.subr.mxu0 0.0
  %519 = vmatpush1.msra.mxu0 0.0
  %520 = vmatprep.subr.mxu0 0.0
  %521 = vmatpush1.msra.mxu0 0.0
  %522 = vmatprep.subr.mxu0 0.0
  %523 = vmatpush1.msra.mxu0 0.0
  %524 = vmatprep.subr.mxu0 0.0
  %525 = vmatpush1.msra.mxu0 0.0
  %526 = vmatprep.subr.mxu0 0.0
  %527 = vmatpush1.msra.mxu0 0.0
  %528 = vmatprep.subr.mxu0 0.0
  %529 = vmatpush1.msra.mxu0 0.0
  %530 = vmatprep.subr.mxu0 0.0
  %531 = vmatpush1.msra.mxu0 0.0
  %532 = vmatprep.subr.mxu0 0.0
  %533 = vmatpush1.msra.mxu0 0.0
  %534 = vmatprep.subr.mxu0 0.0
  %535 = vmatpush1.msra.mxu0 0.0
  %536 = vmatprep.subr.mxu0 0.0
  %537 = vmatpush1.msra.mxu0 0.0
  %538 = vmatprep.subr.mxu0 0.0
  %539 = vmatpush1.msra.mxu0 0.0
  %540 = vmatprep.subr.mxu0 0.0
  %541 = vmatpush1.msra.mxu0 0.0
  %542 = vmatprep.subr.mxu0 0.0
  %543 = vmatpush1.msra.mxu0 0.0
  %544 = vmatprep.subr.mxu0 0.0
  %545 = vmatpush1.msra.mxu0 0.0
  %546 = vmatprep.subr.mxu0 0.0
  %547 = vmatpush1.msra.mxu0 0.0
  %548 = vmatprep.subr.mxu0 0.0
  %549 = vmatpush1.msra.mxu0 0.0
  %550 = vmatprep.subr.mxu0 0.0
  %551 = vmatpush1.msra.mxu0 0.0
  %552 = vmatprep.subr.mxu0 0.0
  %553 = vmatpush1.msra.mxu0 0.0
  %554 = vmatprep.subr.mxu0 0.0
  %555 = vmatpush1.msra.mxu0 0.0
  %556 = vmatprep.subr.mxu0 0.0
  %557 = vmatpush1.msra.mxu0 0.0
  %558 = vmatprep.subr.mxu0 0.0
  %559 = vmatpush1.msra.mxu0 0.0
  %560 = vmatprep.subr.mxu0 0.0
  %561 = vmatpush1.msra.mxu0 0.0
  %562 = vmatprep.subr.mxu0 0.0
  %563 = vmatpush1.msra.mxu0 0.0
  %564 = vmatprep.mubr.f32.mxu0 0.0
  %565 = vmatmul.mubr.f32.gmra.mrb[0].mxu0 %v498
  %v566 = vpop.f32.mrb[0].mxu0
  %v567 = vadd.f32 0.0, %v566
  %v568 = vpop.f32.mrb[0].mxu0
  %569 = vdwg.mxu0
  %v570 = vadd.f32 %v496, %v567
  %v571 = vtanh.pop %v570
  %s572 = scalar_lea.vmem %s2, 48
  %573 = vst.msk [vmem:[%s572] sm:$0xff] %vm23, %v571
  %574 = vst.msk [vmem:[#allocation2] sm:$0xff] %vm23, %v571
  // Predicated region
  $region14: #{rnn_forward.4} parent=0 // pred_check
    _
  $region15: #{rnn_forward.4} parent=0 // pred_check_branch
    %576 = sbr.rel (0) target = $region17
  $region16: #{rnn_forward.4} parent=0 // pred_region
    _
  $region17: #{rnn_forward.4} parent=0 // pred_fallthru
    _
  // Predicated region
  $region18: #{rnn_forward.4} parent=0 // pred_check
    _
  $region19: #{rnn_forward.4} parent=0 // pred_check_branch
    %578 = sbr.rel (0) target = $region21
  $region20: #{rnn_forward.4} parent=0 // pred_region
    _
  $region21: #{rnn_forward.4} parent=0 // pred_fallthru
    _

// kernel: rnn_forward.5
$region0: #{rnn_forward.5}
  #allocation0 [shape = 'u32[]', space=smem, size = 0x4, offset = 0x4, fixed_abs, tag = 'smem constant byte address 0x4 - core index']
  #allocation1 [shape = 'u32[144,128]{1,0:T(1,128)}', space=vmem, size = 0x12000, scoped, tag = 'internal scratch']
  #allocation2 [shape = 'f32[56,1]{1,0:T(8,128)}', space=vmem, size = 0x7000, scoped, tag = 'scratch operand']
  #allocation3 [shape = 'f32[56,1]{1,0:T(8,128)}', space=vmem, size = 0x7000, scoped, tag = 'scratch operand']
  #allocation4 [shape = 'f32[56,1]{1,0:T(8,128)}', space=vmem, size = 0x7000, scoped, tag = 'scratch operand']
  %s0 = inlined_call_operand.vmem [shape: f32[56,32], index: 0, kind: input, shape index: {}]
  %s1 = inlined_call_operand.vmem [shape: s32[56,1], index: 1, kind: input, shape index: {}]
  %s2 = inlined_call_operand.vmem [shape: f32[32,128], index: 2, kind: input, shape index: {}]
  %s3 = inlined_call_operand.vmem [shape: f32[1,128], index: 3, kind: input, shape index: {}]
  %s4 = inlined_call_operand.vmem [shape: f32[56,128], index: 4, kind: output, shape index: {0}]
  %s5 = inlined_call_operand.vmem [shape: f32[56,1], index: 5, kind: output, shape index: {1}]
  %6 = xla_tuple %s4, %s5
  %s7 = sld [smem:[#allocation0]]
  $region42: #{rnn_forward.5} parent=0
    _
  %s9 = ssub.s32 1, %s7
  %s10 = scalar_select 0, %s9, %s7
  // Predicated region
  $region2: #{rnn_forward.5} parent=0 // pred_check
    _
  $region3: #{rnn_forward.5} parent=0 // pred_check_branch
    %12 = sbr.rel (0) target = $region5
  $region4: #{rnn_forward.5} parent=0 // pred_region
    _
  $region5: #{rnn_forward.5} parent=0 // pred_fallthru
    _
  // Predicated region
  $region6: #{rnn_forward.5} parent=0 // pred_check
    _
  $region7: #{rnn_forward.5} parent=0 // pred_check_branch
    %14 = sbr.rel (0) target = $region9
  $region8: #{rnn_forward.5} parent=0 // pred_region
    _
  $region9: #{rnn_forward.5} parent=0 // pred_fallthru
    _
  // Predicated region
  $region10: #{rnn_forward.5} parent=0 // pred_check
    _
  $region11: #{rnn_forward.5} parent=0 // pred_check_branch
    %16 = sbr.rel (0) target = $region13
  $region12: #{rnn_forward.5} parent=0 // pred_region
    _
  $region13: #{rnn_forward.5} parent=0 // pred_fallthru
    _
  // Predicated region
  $region14: #{rnn_forward.5} parent=0 // pred_check
    _
  $region15: #{rnn_forward.5} parent=0 // pred_check_branch
    %18 = sbr.rel (0) target = $region17
  $region16: #{rnn_forward.5} parent=0 // pred_region
    _
  $region17: #{rnn_forward.5} parent=0 // pred_fallthru
    _
  %p19 = scmp.eq.s32.totalorder 0, 0
  // Predicated region
  $region18: #{rnn_forward.5} parent=0 // pred_check
    %p20 = pneg %p19
  $region19: #{rnn_forward.5} parent=0 // pred_check_branch
    %22 = sbr.rel (%p20) target = $region21
  $region20: #{rnn_forward.5} parent=0 // pred_region
    %vm23 = vcmask 7168
    %24 = vst.msk [vmem:[#allocation2] sm:$0xff] %vm23, -inf
    %25 = vst.msk [vmem:[#allocation2 + $0x8] sm:$0xff] %vm23, -inf
    %26 = vst.msk [vmem:[#allocation2 + $0x10] sm:$0xff] %vm23, -inf
    %27 = vst.msk [vmem:[#allocation2 + $0x18] sm:$0xff] %vm23, -inf
    %28 = vst.msk [vmem:[#allocation2 + $0x20] sm:$0xff] %vm23, -inf
    %29 = vst.msk [vmem:[#allocation2 + $0x28] sm:$0xff] %vm23, -inf
    %30 = vst.msk [vmem:[#allocation2 + $0x30] sm:$0xff] %vm23, -inf
    %31 = vst.msk [vmem:[#allocation3] sm:$0xff] %vm23, 0.0
    %32 = vst.msk [vmem:[#allocation3 + $0x8] sm:$0xff] %vm23, 0.0
    %33 = vst.msk [vmem:[#allocation3 + $0x10] sm:$0xff] %vm23, 0.0
    %34 = vst.msk [vmem:[#allocation3 + $0x18] sm:$0xff] %vm23, 0.0
    %35 = vst.msk [vmem:[#allocation3 + $0x20] sm:$0xff] %vm23, 0.0
    %36 = vst.msk [vmem:[#allocation3 + $0x28] sm:$0xff] %vm23, 0.0
    %37 = vst.msk [vmem:[#allocation3 + $0x30] sm:$0xff] %vm23, 0.0
    %38 = vst.msk [vmem:[#allocation4] sm:$0xff] %vm23, 0.0
    %39 = vst.msk [vmem:[#allocation4 + $0x8] sm:$0xff] %vm23, 0.0
    %40 = vst.msk [vmem:[#allocation4 + $0x10] sm:$0xff] %vm23, 0.0
    %41 = vst.msk [vmem:[#allocation4 + $0x18] sm:$0xff] %vm23, 0.0
    %42 = vst.msk [vmem:[#allocation4 + $0x20] sm:$0xff] %vm23, 0.0
    %43 = vst.msk [vmem:[#allocation4 + $0x28] sm:$0xff] %vm23, 0.0
    %44 = vst.msk [vmem:[#allocation4 + $0x30] sm:$0xff] %vm23, 0.0
  $region21: #{rnn_forward.5} parent=0 // pred_fallthru
    _
  %v45 = vld [vmem:[%s2] sm:$0xff]
  %v46 = vld [vmem:[%s2 + $0x8] sm:$0xff]
  %v47 = vld [vmem:[%s2 + $0x10] sm:$0xff]
  %v48 = vld [vmem:[%s2 + $0x18] sm:$0xff]
  %v49 = vld [vmem:[%s0] sm:$0xff]
  %v50 = vld [vmem:[%s0 + $0x8] sm:$0xff]
  %v51 = vld [vmem:[%s0 + $0x10] sm:$0xff]
  %v52 = vld [vmem:[%s0 + $0x18] sm:$0xff]
  %v53 = vld [vmem:[%s0 + $0x20] sm:$0xff]
  %v54 = vld [vmem:[%s0 + $0x28] sm:$0xff]
  %v55 = vld [vmem:[%s0 + $0x30] sm:$0xff]
  %v56 = vld [vmem:[%s3] sm:$0x1]
  %v58 = vlaneseq
  %v59 = vshrl.u32 %v58, 7
  %v60 = vsub.s32 0, %v59
  %v61 = vrot.slane %v56, %v60
  %vm63 = vcmask 261120
  %v65 = vsel %vm63, %v49, 0
  %v68 = vsel %vm63, %v50, 0
  %v71 = vsel %vm63, %v51, 0
  %v74 = vsel %vm63, %v52, 0
  %v77 = vsel %vm63, %v53, 0
  %v80 = vsel %vm63, %v54, 0
  %v83 = vsel %vm63, %v55, 0
  %85 = vmatprep.subr.mxu0 0.0
  %86 = vmatpush1.msra.mxu0 %v45
  %87 = vmatprep.subr.mxu0 0.0
  %88 = vmatpush1.msra.mxu0 %v46
  %89 = vmatprep.subr.mxu0 0.0
  %90 = vmatpush1.msra.mxu0 %v47
  %91 = vmatprep.subr.mxu0 0.0
  %92 = vmatpush1.msra.mxu0 %v48
  %93 = vmatprep.subr.mxu0 0.0
  %94 = vmatpush1.msra.mxu0 0.0
  %95 = vmatprep.subr.mxu0 0.0
  %96 = vmatpush1.msra.mxu0 0.0
  %97 = vmatprep.subr.mxu0 0.0
  %98 = vmatpush1.msra.mxu0 0.0
  %99 = vmatprep.subr.mxu0 0.0
  %100 = vmatpush1.msra.mxu0 0.0
  %101 = vmatprep.subr.mxu0 0.0
  %102 = vmatpush1.msra.mxu0 0.0
  %103 = vmatprep.subr.mxu0 0.0
  %104 = vmatpush1.msra.mxu0 0.0
  %105 = vmatprep.subr.mxu0 0.0
  %106 = vmatpush1.msra.mxu0 0.0
  %107 = vmatprep.subr.mxu0 0.0
  %108 = vmatpush1.msra.mxu0 0.0
  %109 = vmatprep.subr.mxu0 0.0
  %110 = vmatpush1.msra.mxu0 0.0
  %111 = vmatprep.subr.mxu0 0.0
  %112 = vmatpush1.msra.mxu0 0.0
  %113 = vmatprep.subr.mxu0 0.0
  %114 = vmatpush1.msra.mxu0 0.0
  %115 = vmatprep.subr.mxu0 0.0
  %116 = vmatpush1.msra.mxu0 0.0
  %117 = vmatprep.subr.mxu0 0.0
  %118 = vmatpush1.msra.mxu0 0.0
  %119 = vmatprep.subr.mxu0 0.0
  %120 = vmatpush1.msra.mxu0 0.0
  %121 = vmatprep.subr.mxu0 0.0
  %122 = vmatpush1.msra.mxu0 0.0
  %123 = vmatprep.subr.mxu0 0.0
  %124 = vmatpush1.msra.mxu0 0.0
  %125 = vmatprep.subr.mxu0 0.0
  %126 = vmatpush1.msra.mxu0 0.0
  %127 = vmatprep.subr.mxu0 0.0
  %128 = vmatpush1.msra.mxu0 0.0
  %129 = vmatprep.subr.mxu0 0.0
  %130 = vmatpush1.msra.mxu0 0.0
  %131 = vmatprep.subr.mxu0 0.0
  %132 = vmatpush1.msra.mxu0 0.0
  %133 = vmatprep.subr.mxu0 0.0
  %134 = vmatpush1.msra.mxu0 0.0
  %135 = vmatprep.subr.mxu0 0.0
  %136 = vmatpush1.msra.mxu0 0.0
  %137 = vmatprep.subr.mxu0 0.0
  %138 = vmatpush1.msra.mxu0 0.0
  %139 = vmatprep.subr.mxu0 0.0
  %140 = vmatpush1.msra.mxu0 0.0
  %141 = vmatprep.subr.mxu0 0.0
  %142 = vmatpush1.msra.mxu0 0.0
  %143 = vmatprep.subr.mxu0 0.0
  %144 = vmatpush1.msra.mxu0 0.0
  %145 = vmatprep.subr.mxu0 0.0
  %146 = vmatpush1.msra.mxu0 0.0
  %147 = vmatprep.subr.mxu0 0.0
  %148 = vmatpush1.msra.mxu0 0.0
  %149 = vmatprep.mubr.f32.mxu0 0.0
  %150 = vmatmul.mubr.f32.gmra.mrb[0].mxu0 %v65
  %v151 = vpop.f32.mrb[0].mxu0
  %v152 = vadd.f32 %v61, %v151
  %v153 = vpop.f32.mrb[0].mxu0
  %154 = vmatprep.mubr.f32.mxu0 0.0
  %155 = vmatmul.mubr.f32.gmra.mrb[0].mxu0 %v68
  %v156 = vpop.f32.mrb[0].mxu0
  %v157 = vadd.f32 %v61, %v156
  %v158 = vpop.f32.mrb[0].mxu0
  %159 = vmatprep.mubr.f32.mxu0 0.0
  %160 = vmatmul.mubr.f32.gmra.mrb[0].mxu0 %v71
  %v161 = vpop.f32.mrb[0].mxu0
  %v162 = vadd.f32 %v61, %v161
  %v163 = vpop.f32.mrb[0].mxu0
  %164 = vmatprep.mubr.f32.mxu0 0.0
  %165 = vmatmul.mubr.f32.gmra.mrb[0].mxu0 %v74
  %v166 = vpop.f32.mrb[0].mxu0
  %v167 = vadd.f32 %v61, %v166
  %v168 = vpop.f32.mrb[0].mxu0
  %169 = vmatprep.mubr.f32.mxu0 0.0
  %170 = vmatmul.mubr.f32.gmra.mrb[0].mxu0 %v77
  %v171 = vpop.f32.mrb[0].mxu0
  %v172 = vadd.f32 %v61, %v171
  %v173 = vpop.f32.mrb[0].mxu0
  %174 = vmatprep.mubr.f32.mxu0 0.0
  %175 = vmatmul.mubr.f32.gmra.mrb[0].mxu0 %v80
  %v176 = vpop.f32.mrb[0].mxu0
  %v177 = vadd.f32 %v61, %v176
  %v178 = vpop.f32.mrb[0].mxu0
  %179 = vmatprep.mubr.f32.mxu0 0.0
  %180 = vmatmul.mubr.f32.gmra.mrb[0].mxu0 %v83
  %v181 = vpop.f32.mrb[0].mxu0
  %v182 = vadd.f32 %v61, %v181
  %v183 = vpop.f32.mrb[0].mxu0
  %184 = vdwg.mxu0
  %185 = vst [vmem:[%s4] sm:$0xff] %v152
  %186 = vst [vmem:[%s4 + $0x8] sm:$0xff] %v157
  %187 = vst [vmem:[%s4 + $0x10] sm:$0xff] %v162
  %188 = vst [vmem:[%s4 + $0x18] sm:$0xff] %v167
  %189 = vst [vmem:[%s4 + $0x20] sm:$0xff] %v172
  %190 = vst [vmem:[%s4 + $0x28] sm:$0xff] %v177
  %191 = vst [vmem:[%s4 + $0x30] sm:$0xff] %v182
  %v192 = vld [vmem:[%s1] sm:$0xff]
  %v193 = vld [vmem:[%s1 + $0x8] sm:$0xff]
  %v194 = vld [vmem:[%s1 + $0x10] sm:$0xff]
  %v195 = vld [vmem:[%s1 + $0x18] sm:$0xff]
  %v196 = vld [vmem:[%s1 + $0x20] sm:$0xff]
  %v197 = vld [vmem:[%s1 + $0x28] sm:$0xff]
  %v198 = vld [vmem:[%s1 + $0x30] sm:$0xff]
  %v199 = vlaneseq
  %v200 = vand.u32 %v199, 127
  %s201 = smul.u32 0, 128
  %v202 = vstv %s201
  %v203 = vadd.s32 %v200, %v202
  %v204 = vld [vmem:[#allocation4] sm:$0xff]
  %v205 = vld [vmem:[#allocation4 + $0x8] sm:$0xff]
  %v206 = vld [vmem:[#allocation4 + $0x10] sm:$0xff]
  %v207 = vld [vmem:[#allocation4 + $0x18] sm:$0xff]
  %v208 = vld [vmem:[#allocation4 + $0x20] sm:$0xff]
  %v209 = vld [vmem:[#allocation4 + $0x28] sm:$0xff]
  %v210 = vld [vmem:[#allocation4 + $0x30] sm:$0xff]
  %211 = vset.pattern.permute.xlu0 0
  %212 = vperm.xlu0 %211, %v192
  %v213 = vpop.permute.xlu0 %212
  %214 = vset.pattern.permute.xlu0 0
  %215 = vperm.xlu0 %214, %v193
  %v216 = vpop.permute.xlu0 %215
  %217 = vset.pattern.permute.xlu0 0
  %218 = vperm.xlu0 %217, %v194
  %v219 = vpop.permute.xlu0 %218
  %220 = vset.pattern.permute.xlu0 0
  %221 = vperm.xlu0 %220, %v195
  %v222 = vpop.permute.xlu0 %221
  %223 = vset.pattern.permute.xlu0 0
  %224 = vperm.xlu0 %223, %v196
  %v225 = vpop.permute.xlu0 %224
  %226 = vset.pattern.permute.xlu0 0
  %227 = vperm.xlu0 %226, %v197
  %v228 = vpop.permute.xlu0 %227
  %229 = vset.pattern.permute.xlu0 0
  %230 = vperm.xlu0 %229, %v198
  %v231 = vpop.permute.xlu0 %230
  %vm232 = vcmp.eq.s32.totalorder %v203, %v213
  %vm233 = vcmp.eq.s32.totalorder %v203, %v216
  %vm234 = vcmp.eq.s32.totalorder %v203, %v219
  %vm235 = vcmp.eq.s32.totalorder %v203, %v222
  %vm236 = vcmp.eq.s32.totalorder %v203, %v225
  %vm237 = vcmp.eq.s32.totalorder %v203, %v228
  %vm238 = vcmp.eq.s32.totalorder %v203, %v231
  %v239 = vsel %vm232, %v152, 0.0
  %v240 = vsel %vm233, %v157, 0.0
  %v241 = vsel %vm234, %v162, 0.0
  %v242 = vsel %vm235, %v167, 0.0
  %v243 = vsel %vm236, %v172, 0.0
  %v244 = vsel %vm237, %v177, 0.0
  %v245 = vsel %vm238, %v182, 0.0
  %246 = vadd.xlane.f32.xlu0 %v239
  %v247 = vpop.xlane.xlu0 %246
  %248 = vadd.xlane.f32.xlu0 %v240
  %v249 = vpop.xlane.xlu0 %248
  %250 = vadd.xlane.f32.xlu0 %v241
  %v251 = vpop.xlane.xlu0 %250
  %252 = vadd.xlane.f32.xlu0 %v242
  %v253 = vpop.xlane.xlu0 %252
  %254 = vadd.xlane.f32.xlu0 %v243
  %v255 = vpop.xlane.xlu0 %254
  %256 = vadd.xlane.f32.xlu0 %v244
  %v257 = vpop.xlane.xlu0 %256
  %258 = vadd.xlane.f32.xlu0 %v245
  %v259 = vpop.xlane.xlu0 %258
  %v260 = vadd.f32 %v204, %v247
  %v261 = vadd.f32 %v205, %v249
  %v262 = vadd.f32 %v206, %v251
  %v263 = vadd.f32 %v207, %v253
  %v264 = vadd.f32 %v208, %v255
  %v265 = vadd.f32 %v209, %v257
  %v266 = vadd.f32 %v210, %v259
  %vm267 = vcmask 7168
  %268 = vst.msk [vmem:[#allocation4] sm:$0xff] %vm267, %v260
  %269 = vst.msk [vmem:[#allocation4 + $0x8] sm:$0xff] %vm267, %v261
  %270 = vst.msk [vmem:[#allocation4 + $0x10] sm:$0xff] %vm267, %v262
  %271 = vst.msk [vmem:[#allocation4 + $0x18] sm:$0xff] %vm267, %v263
  %272 = vst.msk [vmem:[#allocation4 + $0x20] sm:$0xff] %vm267, %v264
  %273 = vst.msk [vmem:[#allocation4 + $0x28] sm:$0xff] %vm267, %v265
  %274 = vst.msk [vmem:[#allocation4 + $0x30] sm:$0xff] %vm267, %v266
  %v275 = vld [vmem:[#allocation2] sm:$0xff]
  %v276 = vld [vmem:[#allocation2 + $0x8] sm:$0xff]
  %v277 = vld [vmem:[#allocation2 + $0x10] sm:$0xff]
  %v278 = vld [vmem:[#allocation2 + $0x18] sm:$0xff]
  %v279 = vld [vmem:[#allocation2 + $0x20] sm:$0xff]
  %v280 = vld [vmem:[#allocation2 + $0x28] sm:$0xff]
  %v281 = vld [vmem:[#allocation2 + $0x30] sm:$0xff]
  %282 = vmax.xlane.f32.xlu0 %v152
  %v283 = vpop.xlane.xlu0 %282
  %284 = vmax.xlane.f32.xlu0 %v157
  %v285 = vpop.xlane.xlu0 %284
  %286 = vmax.xlane.f32.xlu0 %v162
  %v287 = vpop.xlane.xlu0 %286
  %288 = vmax.xlane.f32.xlu0 %v167
  %v289 = vpop.xlane.xlu0 %288
  %290 = vmax.xlane.f32.xlu0 %v172
  %v291 = vpop.xlane.xlu0 %290
  %292 = vmax.xlane.f32.xlu0 %v177
  %v293 = vpop.xlane.xlu0 %292
  %294 = vmax.xlane.f32.xlu0 %v182
  %v295 = vpop.xlane.xlu0 %294
  %v296 = vmax.f32 %v275, %v283
  %v297 = vmax.f32 %v276, %v285
  %v298 = vmax.f32 %v277, %v287
  %v299 = vmax.f32 %v278, %v289
  %v300 = vmax.f32 %v279, %v291
  %v301 = vmax.f32 %v280, %v293
  %v302 = vmax.f32 %v281, %v295
  %v303 = vld [vmem:[#allocation3] sm:$0xff]
  %v304 = vld [vmem:[#allocation3 + $0x8] sm:$0xff]
  %v305 = vld [vmem:[#allocation3 + $0x10] sm:$0xff]
  %v306 = vld [vmem:[#allocation3 + $0x18] sm:$0xff]
  %v307 = vld [vmem:[#allocation3 + $0x20] sm:$0xff]
  %v308 = vld [vmem:[#allocation3 + $0x28] sm:$0xff]
  %v309 = vld [vmem:[#allocation3 + $0x30] sm:$0xff]
  %v310 = vsub.f32 %v275, %v296
  %v311 = vsub.f32 %v276, %v297
  %v312 = vsub.f32 %v277, %v298
  %v313 = vsub.f32 %v278, %v299
  %v314 = vsub.f32 %v279, %v300
  %v315 = vsub.f32 %v280, %v301
  %v316 = vsub.f32 %v281, %v302
  %v317 = vmul.f32 %v310, 1.442695
  %v318 = vpow.pop %v317
  %v319 = vmul.f32 %v311, 1.442695
  %v320 = vpow.pop %v319
  %v321 = vmul.f32 %v312, 1.442695
  %v322 = vpow.pop %v321
  %v323 = vmul.f32 %v313, 1.442695
  %v324 = vpow.pop %v323
  %v325 = vmul.f32 %v314, 1.442695
  %v326 = vpow.pop %v325
  %v327 = vmul.f32 %v315, 1.442695
  %v328 = vpow.pop %v327
  %v329 = vmul.f32 %v316, 1.442695
  %v330 = vpow.pop %v329
  %v331 = vmul.f32 %v303, %v318
  %v332 = vmul.f32 %v304, %v320
  %v333 = vmul.f32 %v305, %v322
  %v334 = vmul.f32 %v306, %v324
  %v335 = vmul.f32 %v307, %v326
  %v336 = vmul.f32 %v308, %v328
  %v337 = vmul.f32 %v309, %v330
  %339 = vset.pattern.permute.xlu0 0
  %340 = vperm.xlu0 %339, %v296
  %v341 = vpop.permute.xlu0 %340
  %344 = vset.pattern.permute.xlu0 0
  %345 = vperm.xlu0 %344, %v297
  %v346 = vpop.permute.xlu0 %345
  %349 = vset.pattern.permute.xlu0 0
  %350 = vperm.xlu0 %349, %v298
  %v351 = vpop.permute.xlu0 %350
  %354 = vset.pattern.permute.xlu0 0
  %355 = vperm.xlu0 %354, %v299
  %v356 = vpop.permute.xlu0 %355
  %359 = vset.pattern.permute.xlu0 0
  %360 = vperm.xlu0 %359, %v300
  %v361 = vpop.permute.xlu0 %360
  %364 = vset.pattern.permute.xlu0 0
  %365 = vperm.xlu0 %364, %v301
  %v366 = vpop.permute.xlu0 %365
  %369 = vset.pattern.permute.xlu0 0
  %370 = vperm.xlu0 %369, %v302
  %v371 = vpop.permute.xlu0 %370
  %v373 = vsub.f32 %v152, %v341
  %v374 = vsub.f32 %v157, %v346
  %v375 = vsub.f32 %v162, %v351
  %v376 = vsub.f32 %v167, %v356
  %v377 = vsub.f32 %v172, %v361
  %v378 = vsub.f32 %v177, %v366
  %v379 = vsub.f32 %v182, %v371
  %v380 = vmul.f32 %v373, 1.442695
  %v381 = vpow.pop %v380
  %v382 = vmul.f32 %v374, 1.442695
  %v383 = vpow.pop %v382
  %v384 = vmul.f32 %v375, 1.442695
  %v385 = vpow.pop %v384
  %v386 = vmul.f32 %v376, 1.442695
  %v387 = vpow.pop %v386
  %v388 = vmul.f32 %v377, 1.442695
  %v389 = vpow.pop %v388
  %v390 = vmul.f32 %v378, 1.442695
  %v391 = vpow.pop %v390
  %v392 = vmul.f32 %v379, 1.442695
  %v393 = vpow.pop %v392
  %394 = vadd.xlane.f32.xlu0 %v381
  %v395 = vpop.xlane.xlu0 %394
  %396 = vadd.xlane.f32.xlu0 %v383
  %v397 = vpop.xlane.xlu0 %396
  %398 = vadd.xlane.f32.xlu0 %v385
  %v399 = vpop.xlane.xlu0 %398
  %400 = vadd.xlane.f32.xlu0 %v387
  %v401 = vpop.xlane.xlu0 %400
  %402 = vadd.xlane.f32.xlu0 %v389
  %v403 = vpop.xlane.xlu0 %402
  %404 = vadd.xlane.f32.xlu0 %v391
  %v405 = vpop.xlane.xlu0 %404
  %406 = vadd.xlane.f32.xlu0 %v393
  %v407 = vpop.xlane.xlu0 %406
  %v408 = vadd.f32 %v331, %v395
  %v409 = vadd.f32 %v332, %v397
  %v410 = vadd.f32 %v333, %v399
  %v411 = vadd.f32 %v334, %v401
  %v412 = vadd.f32 %v335, %v403
  %v413 = vadd.f32 %v336, %v405
  %v414 = vadd.f32 %v337, %v407
  %415 = vst.msk [vmem:[#allocation3] sm:$0xff] %vm267, %v408
  %416 = vst.msk [vmem:[#allocation3 + $0x8] sm:$0xff] %vm267, %v409
  %417 = vst.msk [vmem:[#allocation3 + $0x10] sm:$0xff] %vm267, %v410
  %418 = vst.msk [vmem:[#allocation3 + $0x18] sm:$0xff] %vm267, %v411
  %419 = vst.msk [vmem:[#allocation3 + $0x20] sm:$0xff] %vm267, %v412
  %420 = vst.msk [vmem:[#allocation3 + $0x28] sm:$0xff] %vm267, %v413
  %421 = vst.msk [vmem:[#allocation3 + $0x30] sm:$0xff] %vm267, %v414
  %422 = vst.msk [vmem:[#allocation2] sm:$0xff] %vm267, %v296
  %423 = vst.msk [vmem:[#allocation2 + $0x8] sm:$0xff] %vm267, %v297
  %424 = vst.msk [vmem:[#allocation2 + $0x10] sm:$0xff] %vm267, %v298
  %425 = vst.msk [vmem:[#allocation2 + $0x18] sm:$0xff] %vm267, %v299
  %426 = vst.msk [vmem:[#allocation2 + $0x20] sm:$0xff] %vm267, %v300
  %427 = vst.msk [vmem:[#allocation2 + $0x28] sm:$0xff] %vm267, %v301
  %428 = vst.msk [vmem:[#allocation2 + $0x30] sm:$0xff] %vm267, %v302
  // Predicated region
  $region22: #{rnn_forward.5} parent=0 // pred_check
    %p429 = pneg %p19
  $region23: #{rnn_forward.5} parent=0 // pred_check_branch
    %431 = sbr.rel (%p429) target = $region25
  $region24: #{rnn_forward.5} parent=0 // pred_region
    %v432 = vld [vmem:[#allocation2] sm:$0xff]
    %v433 = vld [vmem:[#allocation2 + $0x8] sm:$0xff]
    %v434 = vld [vmem:[#allocation2 + $0x10] sm:$0xff]
    %v435 = vld [vmem:[#allocation2 + $0x18] sm:$0xff]
    %v436 = vld [vmem:[#allocation2 + $0x20] sm:$0xff]
    %v437 = vld [vmem:[#allocation2 + $0x28] sm:$0xff]
    %v438 = vld [vmem:[#allocation2 + $0x30] sm:$0xff]
    %v439 = vld [vmem:[#allocation3] sm:$0xff]
    %v440 = vld [vmem:[#allocation3 + $0x8] sm:$0xff]
    %v441 = vld [vmem:[#allocation3 + $0x10] sm:$0xff]
    %v442 = vld [vmem:[#allocation3 + $0x18] sm:$0xff]
    %v443 = vld [vmem:[#allocation3 + $0x20] sm:$0xff]
    %v444 = vld [vmem:[#allocation3 + $0x28] sm:$0xff]
    %v445 = vld [vmem:[#allocation3 + $0x30] sm:$0xff]
    %v446 = vlog2.pop %v439
    %v447 = vmul.f32 %v446, 0.6931472
    %v448 = vlog2.pop %v440
    %v449 = vmul.f32 %v448, 0.6931472
    %v450 = vlog2.pop %v441
    %v451 = vmul.f32 %v450, 0.6931472
    %v452 = vlog2.pop %v442
    %v453 = vmul.f32 %v452, 0.6931472
    %v454 = vlog2.pop %v443
    %v455 = vmul.f32 %v454, 0.6931472
    %v456 = vlog2.pop %v444
    %v457 = vmul.f32 %v456, 0.6931472
    %v458 = vlog2.pop %v445
    %v459 = vmul.f32 %v458, 0.6931472
    %v460 = vadd.f32 %v432, %v447
    %v461 = vadd.f32 %v433, %v449
    %v462 = vadd.f32 %v434, %v451
    %v463 = vadd.f32 %v435, %v453
    %v464 = vadd.f32 %v436, %v455
    %v465 = vadd.f32 %v437, %v457
    %v466 = vadd.f32 %v438, %v459
    %vm467 = vcmp.ne.s32.totalorder %v192, 0
    %vm468 = vcmp.ne.s32.totalorder %v193, 0
    %vm469 = vcmp.ne.s32.totalorder %v194, 0
    %vm470 = vcmp.ne.s32.totalorder %v195, 0
    %vm471 = vcmp.ne.s32.totalorder %v196, 0
    %vm472 = vcmp.ne.s32.totalorder %v197, 0
    %vm473 = vcmp.ne.s32.totalorder %v198, 0
    %v474 = vsel %vm467, 1, 0
    %v475 = vsel %vm468, 1, 0
    %v476 = vsel %vm469, 1, 0
    %v477 = vsel %vm470, 1, 0
    %v478 = vsel %vm471, 1, 0
    %v479 = vsel %vm472, 1, 0
    %v480 = vsel %vm473, 1, 0
    %v481 = vcvt.s32.f32 %v474
    %v482 = vcvt.s32.f32 %v475
    %v483 = vcvt.s32.f32 %v476
    %v484 = vcvt.s32.f32 %v477
    %v485 = vcvt.s32.f32 %v478
    %v486 = vcvt.s32.f32 %v479
    %v487 = vcvt.s32.f32 %v480
    %v488 = vld [vmem:[#allocation4] sm:$0xff]
    %v489 = vld [vmem:[#allocation4 + $0x8] sm:$0xff]
    %v490 = vld [vmem:[#allocation4 + $0x10] sm:$0xff]
    %v491 = vld [vmem:[#allocation4 + $0x18] sm:$0xff]
    %v492 = vld [vmem:[#allocation4 + $0x20] sm:$0xff]
    %v493 = vld [vmem:[#allocation4 + $0x28] sm:$0xff]
    %v494 = vld [vmem:[#allocation4 + $0x30] sm:$0xff]
    %v495 = vsub.f32 %v460, %v488
    %v496 = vsub.f32 %v461, %v489
    %v497 = vsub.f32 %v462, %v490
    %v498 = vsub.f32 %v463, %v491
    %v499 = vsub.f32 %v464, %v492
    %v500 = vsub.f32 %v465, %v493
    %v501 = vsub.f32 %v466, %v494
    %v502 = vmul.f32 %v495, %v481
    %v503 = vmul.f32 %v496, %v482
    %v504 = vmul.f32 %v497, %v483
    %v505 = vmul.f32 %v498, %v484
    %v506 = vmul.f32 %v499, %v485
    %v507 = vmul.f32 %v500, %v486
    %v508 = vmul.f32 %v501, %v487
    %509 = vst.msk [vmem:[%s5] sm:$0xff] %vm267, %v502
    %510 = vst.msk [vmem:[%s5 + $0x8] sm:$0xff] %vm267, %v503
    %511 = vst.msk [vmem:[%s5 + $0x10] sm:$0xff] %vm267, %v504
    %512 = vst.msk [vmem:[%s5 + $0x18] sm:$0xff] %vm267, %v505
    %513 = vst.msk [vmem:[%s5 + $0x20] sm:$0xff] %vm267, %v506
    %514 = vst.msk [vmem:[%s5 + $0x28] sm:$0xff] %vm267, %v507
    %515 = vst.msk [vmem:[%s5 + $0x30] sm:$0xff] %vm267, %v508
  $region25: #{rnn_forward.5} parent=0 // pred_fallthru
    _
  // Predicated region
  $region26: #{rnn_forward.5} parent=0 // pred_check
    _
  $region27: #{rnn_forward.5} parent=0 // pred_check_branch
    %517 = sbr.rel (0) target = $region29
  $region28: #{rnn_forward.5} parent=0 // pred_region
    _
  $region29: #{rnn_forward.5} parent=0 // pred_fallthru
    _
  // Predicated region
  $region30: #{rnn_forward.5} parent=0 // pred_check
    _
  $region31: #{rnn_forward.5} parent=0 // pred_check_branch
    %519 = sbr.rel (0) target = $region33
  $region32: #{rnn_forward.5} parent=0 // pred_region
    _
  $region33: #{rnn_forward.5} parent=0 // pred_fallthru
    _
  // Predicated region
  $region34: #{rnn_forward.5} parent=0 // pred_check
    _
  $region35: #{rnn_forward.5} parent=0 // pred_check_branch
    %521 = sbr.rel (0) target = $region37
  $region36: #{rnn_forward.5} parent=0 // pred_region
    _
  $region37: #{rnn_forward.5} parent=0 // pred_fallthru
    _
  // Predicated region
  $region38: #{rnn_forward.5} parent=0 // pred_check
    _
  $region39: #{rnn_forward.5} parent=0 // pred_check_branch
    %523 = sbr.rel (0) target = $region41
  $region40: #{rnn_forward.5} parent=0 // pred_region
    _
  $region41: #{rnn_forward.5} parent=0 // pred_fallthru
    _

</llo_original>
